<compile_context>
chip_gen: v7x
topology: tpu7x:2x2x1
jax: 0.10.0
libtpu: 0.0.40
codegen_flags: <defaults>
</compile_context>

<pallas_src>
import functools

import jax
import jax.numpy as jnp
from jax.experimental import pallas as pl
from jax.experimental.pallas import tpu as pltpu


# ---------------------------------------------------------------------------
# Kernel: one image (H rows, lane-packed W*C columns) per grid step.
# ---------------------------------------------------------------------------
def _bottleneck_kernel(x_ref, w1_ref, b1_ref, w2u_ref, w2m_ref, w2d_ref,
                       b2_ref, w3m_ref, w3i_ref, b3_ref, o_ref):
    H = x_ref.shape[0]                                   # rows of this image (static)
    x = x_ref[...]                                       # (H, W*Cin_pad) bf16

    # conv1: 1x1 conv (block-diagonal, BN scale folded) + bias + ReLU
    h1 = jnp.dot(x, w1_ref[...], preferred_element_type=jnp.float32)
    h1 = jnp.maximum(h1 + b1_ref[...], 0.0)              # (H, W*Cmid) f32

    # conv2: 3x3 conv (stride 1, pad 1) as three accumulating band matmuls.
    #   dy = -1/+1 taps: sublane roll by one row + in-kernel boundary mask,
    #   dx = -1/0/+1 taps folded into the band-block weights (x edge = zeros).
    row = jax.lax.broadcasted_iota(jnp.int32, h1.shape, 0)
    up = jnp.where(row != 0, pltpu.roll(h1, shift=1, axis=0), 0.0)
    dn = jnp.where(row != H - 1, pltpu.roll(h1, shift=H - 1, axis=0), 0.0)

    h1b = h1.astype(jnp.bfloat16)
    upb = up.astype(jnp.bfloat16)
    dnb = dn.astype(jnp.bfloat16)
    h2 = (jnp.dot(upb, w2u_ref[...], preferred_element_type=jnp.float32)
          + jnp.dot(h1b, w2m_ref[...], preferred_element_type=jnp.float32)
          + jnp.dot(dnb, w2d_ref[...], preferred_element_type=jnp.float32))
    h2 = jnp.maximum(h2 + b2_ref[...], 0.0)              # (H, W*Cmid) f32

    # conv3 (1x1) + identity shortcut (1x1 / eye) as two accumulating dots
    out = (jnp.dot(h2.astype(jnp.bfloat16), w3m_ref[...],
                   preferred_element_type=jnp.float32)
           + jnp.dot(x, w3i_ref[...], preferred_element_type=jnp.float32))
    o_ref[...] = jnp.maximum(out + b3_ref[...], 0.0)     # (H, W*Cout) f32


# ---------------------------------------------------------------------------
# Trace-time weight packing for the lane-packed layout (run ONCE, outside the
# per-call forward path).
# ---------------------------------------------------------------------------
def _block_diag(w, W):
    """(Ci, Co) -> (W*Ci, W*Co): one copy of w per spatial x position."""
    eye = jnp.eye(W, dtype=w.dtype)
    Ci, Co = w.shape
    return jnp.einsum("ab,cd->acbd", eye, w).reshape(W * Ci, W * Co)


def _band_block_dy(w_dy, W):
    """(3, Ci, Co) dx-taps for one dy -> (W*Ci, W*Co) banded weight.

    Row = xi*Ci + d, col = xo*Co + e; nonzero only where xi - xo = dx in
    {-1, 0, 1}.  Missing xi at the x edges => zeros, so horizontal 'same'
    padding needs no runtime masking.
    """
    Ci, Co = w_dy.shape[1], w_dy.shape[2]
    xi = jnp.arange(W)[:, None]
    xo = jnp.arange(W)[None, :]
    m = jnp.zeros((W, Ci, W, Co), w_dy.dtype)
    for j, dx in enumerate((-1, 0, 1)):                  # kx = j, dx = kx - 1
        sel = (xi - xo == dx).astype(w_dy.dtype)
        m = m + jnp.einsum("io,de->idoe", sel, w_dy[j])
    return m.reshape(W * Ci, W * Co)


def _pad_channels_for_lanes(cin, W, lane=128):
    c = cin
    while (W * c) % lane != 0:
        c += 1
    return c


def pack_params(p, W, dtype=jnp.bfloat16):
    """Fold BN into conv weights and pack for the lane layout. Call once."""
    Cin = p["w1"].shape[0]
    Cinp = _pad_channels_for_lanes(Cin, W)

    w1 = jnp.pad(p["w1"] * p["s1"], ((0, Cinp - Cin), (0, 0)))
    wid = jnp.pad(p["wid"] * p["sid"], ((0, Cinp - Cin), (0, 0)))
    w2f = p["w2_hwio"] * p["s2"][0]                      # (3,3,Cmid,Cmid)

    return {
        "cin_pad": Cinp,
        "w1p": _block_diag(w1, W).astype(dtype),                      # (W*Cinp, W*Cmid)
        "b1p": jnp.tile(p["b1"], (1, W)).astype(jnp.float32),         # (1, W*Cmid)
        "w2u": _band_block_dy(w2f[0], W).astype(dtype),               # (W*Cmid, W*Cmid)
        "w2m": _band_block_dy(w2f[1], W).astype(dtype),
        "w2d": _band_block_dy(w2f[2], W).astype(dtype),
        "b2p": jnp.tile(p["b2"], (1, W)).astype(jnp.float32),
        "w3m": _block_diag(p["w3"] * p["s3"], W).astype(dtype),       # (W*Cmid, W*Cout)
        "w3i": _block_diag(wid, W).astype(dtype),                     # (W*Cinp, W*Cout)
        "b3p": jnp.tile(p["b3"] + p["bid"], (1, W)).astype(jnp.float32),
    }


# ---------------------------------------------------------------------------
# Forward wrapper
# ---------------------------------------------------------------------------
def bottleneck_forward(x_nchw, pk, strides=1):
    """Pallas forward. x_nchw: (N, Cin, H, W) f32 -> (N, Cout, H', W') f32."""
    N, Cin, _, _ = x_nchw.shape
    x = jnp.transpose(x_nchw, (0, 2, 3, 1))              # NHWC
    if strides != 1:
        # The module strides conv1 and the identity 1x1 (conv2 is stride 1),
        # so striding == spatial subsampling of x before everything.
        x = x[:, ::strides, ::strides, :]
    _, H, W, _ = x.shape

    Cinp = pk["w1p"].shape[0] // W
    Cout = pk["b3p"].shape[1] // W
    if Cinp > Cin:                                       # lane-dense padding
        x = jnp.pad(x, ((0, 0), (0, 0), (0, 0), (0, Cinp - Cin)))
    xp = x.reshape(N * H, W * Cinp).astype(jnp.bfloat16)

    operands = (xp, pk["w1p"], pk["b1p"], pk["w2u"], pk["w2m"], pk["w2d"],
                pk["b2p"], pk["w3m"], pk["w3i"], pk["b3p"])

    def img_spec(cols):                                  # one whole image per block
        return pl.BlockSpec((H, cols), lambda n: (n, 0))

    def const_spec(shape):                               # resident weights/biases
        nd = len(shape)
        return pl.BlockSpec(shape, lambda n, _nd=nd: (0,) * _nd)

    out = pl.pallas_call(
        _bottleneck_kernel,
        out_shape=jax.ShapeDtypeStruct((N * H, W * Cout), jnp.float32),
        grid=(N,),
        in_specs=[img_spec(W * Cinp)] + [const_spec(a.shape) for a in operands[1:]],
        out_specs=img_spec(W * Cout),
        compiler_params=pltpu.CompilerParams(
            dimension_semantics=("parallel",),
            vmem_limit_bytes=64 * 1024 * 1024),
    )(*operands)

    out = out.reshape(N, H, W, Cout)
    return jnp.transpose(out, (0, 3, 1, 2))              # back to NCHW


# ---------------------------------------------------------------------------
# Deterministic parameter construction (synthetic, BN folded to scale/bias).
# ---------------------------------------------------------------------------
def init_params(key, filter_nums, expansion):
    cin, cmid, cout = filter_nums
    ks = jax.random.split(key, 8)

    def conv_w(k, shape):
        return 0.1 * jax.random.normal(k, shape, jnp.float32)

    def bn_fold(k, c, eps=1e-5):
        k1, k2, k3, k4 = jax.random.split(k, 4)
        gamma = 1.0 + 0.1 * jax.random.normal(k1, (c,), jnp.float32)
        beta = 0.1 * jax.random.normal(k2, (c,), jnp.float32)
        mean = 0.1 * jax.random.normal(k3, (c,), jnp.float32)
        var = jnp.abs(jax.random.normal(k4, (c,), jnp.float32)) + 0.5
        scale = gamma / jnp.sqrt(var + eps)
        bias = beta - mean * scale
        return scale.reshape(1, c), bias.reshape(1, c)

    p = {
        "w1": conv_w(ks[0], (cin, cmid)),
        "w2_hwio": conv_w(ks[2], (3, 3, cmid, cmid)),    # HWIO
        "w3": conv_w(ks[4], (cmid, cout)),
    }
    p["s1"], p["b1"] = bn_fold(ks[1], cmid)
    p["s2"], p["b2"] = bn_fold(ks[3], cmid)
    p["s3"], p["b3"] = bn_fold(ks[5], cout)
    if expansion:
        p["wid"] = conv_w(ks[6], (cin, cout))
        p["sid"], p["bid"] = bn_fold(ks[7], cout)
    else:
        assert cin == cout, "identity shortcut requires cin == cout"
        p["wid"] = jnp.eye(cin, dtype=jnp.float32)
        p["sid"] = jnp.ones((1, cout), jnp.float32)
        p["bid"] = jnp.zeros((1, cout), jnp.float32)
    return p


# ---------------------------------------------------------------------------
# Pure-JAX f32 reference (same folded-BN semantics) for verification.
# ---------------------------------------------------------------------------
def reference_forward(x_nchw, p, strides=1):
    x = jnp.transpose(x_nchw, (0, 2, 3, 1))
    if strides != 1:
        x = x[:, ::strides, ::strides, :]
    h1 = jnp.maximum(
        jnp.einsum("nhwc,cd->nhwd", x, p["w1"]) * p["s1"][0] + p["b1"][0], 0.0)
    h2 = jax.lax.conv_general_dilated(
        h1, p["w2_hwio"], (1, 1), [(1, 1), (1, 1)],
        dimension_numbers=("NHWC", "HWIO", "NHWC"))
    h2 = jnp.maximum(h2 * p["s2"][0] + p["b2"][0], 0.0)
    h3 = jnp.einsum("nhwc,cd->nhwd", h2, p["w3"]) * p["s3"][0] + p["b3"][0]
    idn = jnp.einsum("nhwc,cd->nhwd", x, p["wid"]) * p["sid"][0] + p["bid"][0]
    out = jnp.maximum(idn + h3, 0.0)
    return jnp.transpose(out, (0, 3, 1, 2))


if __name__ == "__main__":
    # BottleneckBlock(filter_nums=(4, 8, 16), strides=1, expansion=True)
    filter_nums = (4, 8, 16)
    strides = 1
    expansion = True

    key = jax.random.PRNGKey(0)
    kx, kp = jax.random.split(key)
    x = jax.random.normal(kx, (2, 4, 16, 16), jnp.float32)       # NCHW input
    params = init_params(kp, filter_nums, expansion)

    # Pack (BN fold + lane layout) ONCE, outside the per-call forward path.
    W_eff = x.shape[3] // strides if strides != 1 else x.shape[3]
    packed = jax.tree_util.tree_map(
        lambda a: a, pack_params(params, W=W_eff))
    packed = {k: v for k, v in packed.items() if k != "cin_pad"}

    fwd = jax.jit(functools.partial(bottleneck_forward, strides=strides))
    out = fwd(x, packed)
    out = jax.block_until_ready(out)

    ref = reference_forward(x, params, strides=strides)
    assert out.shape == ref.shape, (out.shape, ref.shape)
    # bf16 MXU operands vs f32 reference -> loosened tolerance.
    assert jnp.allclose(out, ref, rtol=5e-2, atol=5e-2), (
        float(jnp.max(jnp.abs(out - ref))))

    print("KERNEL_OK")
</pallas_src>

<mosaic_0001>
module attributes {stable_mosaic.version = 11 : i64} {
  func.func @_bottleneck_kernel(%arg0: i32, %arg1: memref<16x128xbf16, #tpu.memory_space<vmem>>, %arg2: memref<128x128xbf16, #tpu.memory_space<vmem>>, %arg3: memref<1x128xf32, #tpu.memory_space<vmem>>, %arg4: memref<128x128xbf16, #tpu.memory_space<vmem>>, %arg5: memref<128x128xbf16, #tpu.memory_space<vmem>>, %arg6: memref<128x128xbf16, #tpu.memory_space<vmem>>, %arg7: memref<1x128xf32, #tpu.memory_space<vmem>>, %arg8: memref<128x256xbf16, #tpu.memory_space<vmem>>, %arg9: memref<128x256xbf16, #tpu.memory_space<vmem>>, %arg10: memref<1x256xf32, #tpu.memory_space<vmem>>, %arg11: memref<16x256xf32, #tpu.memory_space<vmem>>) attributes {dimension_semantics = [#tpu.dimension_semantics<parallel>], iteration_bounds = array<i64: 2>, scalar_prefetch = 0 : i64, scratch_operands = 0 : i64, tpu.core_type = #tpu.core_type<tc>, window_params = [{transform_indices = @transform_0, window_bounds = array<i64: 16, 128>}, {pipeline_mode = #tpu.pipeline_mode<synchronous>, transform_indices = @transform_1, window_bounds = array<i64: 128, 128>}, {pipeline_mode = #tpu.pipeline_mode<synchronous>, transform_indices = @transform_2, window_bounds = array<i64: 1, 128>}, {pipeline_mode = #tpu.pipeline_mode<synchronous>, transform_indices = @transform_3, window_bounds = array<i64: 128, 128>}, {pipeline_mode = #tpu.pipeline_mode<synchronous>, transform_indices = @transform_4, window_bounds = array<i64: 128, 128>}, {pipeline_mode = #tpu.pipeline_mode<synchronous>, transform_indices = @transform_5, window_bounds = array<i64: 128, 128>}, {pipeline_mode = #tpu.pipeline_mode<synchronous>, transform_indices = @transform_6, window_bounds = array<i64: 1, 128>}, {pipeline_mode = #tpu.pipeline_mode<synchronous>, transform_indices = @transform_7, window_bounds = array<i64: 128, 256>}, {pipeline_mode = #tpu.pipeline_mode<synchronous>, transform_indices = @transform_8, window_bounds = array<i64: 128, 256>}, {pipeline_mode = #tpu.pipeline_mode<synchronous>, transform_indices = @transform_9, window_bounds = array<i64: 1, 256>}, {transform_indices = @transform_10, window_bounds = array<i64: 16, 256>}]} {
    %c0 = arith.constant 0 : index
    %c0_0 = arith.constant 0 : index
    %0 = vector.load %arg1[%c0, %c0_0] : memref<16x128xbf16, #tpu.memory_space<vmem>>, vector<16x128xbf16>
    %c0_1 = arith.constant 0 : index
    %c0_2 = arith.constant 0 : index
    %1 = vector.load %arg2[%c0_1, %c0_2] : memref<128x128xbf16, #tpu.memory_space<vmem>>, vector<128x128xbf16>
    %cst = arith.constant dense<0.000000e+00> : vector<16x128xf32>
    %2 = tpu.matmul %0, %1, %cst {dimension_numbers = #tpu.dot_dimension_numbers<[1], [0], [0], [1], [0, 0, 1, 1], [], []>} : vector<16x128xbf16>, vector<128x128xbf16>, vector<16x128xf32> -> vector<16x128xf32>
    %c0_3 = arith.constant 0 : index
    %c0_4 = arith.constant 0 : index
    %3 = vector.load %arg3[%c0_3, %c0_4] : memref<1x128xf32, #tpu.memory_space<vmem>>, vector<1x128xf32>
    %4 = vector.broadcast %3 : vector<1x128xf32> to vector<16x128xf32>
    %5 = arith.addf %2, %4 : vector<16x128xf32>
    %cst_5 = arith.constant 0.000000e+00 : f32
    %6 = vector.broadcast %cst_5 : f32 to vector<16x128xf32>
    %7 = arith.maximumf %5, %6 : vector<16x128xf32>
    %8 = tpu.iota {dimensions = array<i32: 0>} : vector<16x128xi32>
    %c0_i32 = arith.constant 0 : i32
    %9 = vector.broadcast %c0_i32 : i32 to vector<16x128xi32>
    %10 = arith.cmpi ne, %8, %9 : vector<16x128xi32>
    %c1_i32 = arith.constant 1 : i32
    %11 = tpu.dynamic_rotate %7 by %c1_i32 dim 0 : vector<16x128xf32>, i32 -> vector<16x128xf32>
    %cst_6 = arith.constant 0.000000e+00 : f32
    %12 = vector.broadcast %cst_6 : f32 to vector<16x128xf32>
    %13 = arith.select %10, %11, %12 : vector<16x128xi1>, vector<16x128xf32>
    %c15_i32 = arith.constant 15 : i32
    %14 = vector.broadcast %c15_i32 : i32 to vector<16x128xi32>
    %15 = arith.cmpi ne, %8, %14 : vector<16x128xi32>
    %c15_i32_7 = arith.constant 15 : i32
    %16 = tpu.dynamic_rotate %7 by %c15_i32_7 dim 0 : vector<16x128xf32>, i32 -> vector<16x128xf32>
    %cst_8 = arith.constant 0.000000e+00 : f32
    %17 = vector.broadcast %cst_8 : f32 to vector<16x128xf32>
    %18 = arith.select %15, %16, %17 : vector<16x128xi1>, vector<16x128xf32>
    %19 = arith.truncf %7 : vector<16x128xf32> to vector<16x128xbf16>
    %20 = arith.truncf %13 : vector<16x128xf32> to vector<16x128xbf16>
    %21 = arith.truncf %18 : vector<16x128xf32> to vector<16x128xbf16>
    %c0_9 = arith.constant 0 : index
    %c0_10 = arith.constant 0 : index
    %22 = vector.load %arg4[%c0_9, %c0_10] : memref<128x128xbf16, #tpu.memory_space<vmem>>, vector<128x128xbf16>
    %cst_11 = arith.constant dense<0.000000e+00> : vector<16x128xf32>
    %23 = tpu.matmul %20, %22, %cst_11 {dimension_numbers = #tpu.dot_dimension_numbers<[1], [0], [0], [1], [0, 0, 1, 1], [], []>} : vector<16x128xbf16>, vector<128x128xbf16>, vector<16x128xf32> -> vector<16x128xf32>
    %c0_12 = arith.constant 0 : index
    %c0_13 = arith.constant 0 : index
    %24 = vector.load %arg5[%c0_12, %c0_13] : memref<128x128xbf16, #tpu.memory_space<vmem>>, vector<128x128xbf16>
    %cst_14 = arith.constant dense<0.000000e+00> : vector<16x128xf32>
    %25 = tpu.matmul %19, %24, %cst_14 {dimension_numbers = #tpu.dot_dimension_numbers<[1], [0], [0], [1], [0, 0, 1, 1], [], []>} : vector<16x128xbf16>, vector<128x128xbf16>, vector<16x128xf32> -> vector<16x128xf32>
    %26 = arith.addf %23, %25 : vector<16x128xf32>
    %c0_15 = arith.constant 0 : index
    %c0_16 = arith.constant 0 : index
    %27 = vector.load %arg6[%c0_15, %c0_16] : memref<128x128xbf16, #tpu.memory_space<vmem>>, vector<128x128xbf16>
    %cst_17 = arith.constant dense<0.000000e+00> : vector<16x128xf32>
    %28 = tpu.matmul %21, %27, %cst_17 {dimension_numbers = #tpu.dot_dimension_numbers<[1], [0], [0], [1], [0, 0, 1, 1], [], []>} : vector<16x128xbf16>, vector<128x128xbf16>, vector<16x128xf32> -> vector<16x128xf32>
    %29 = arith.addf %26, %28 : vector<16x128xf32>
    %c0_18 = arith.constant 0 : index
    %c0_19 = arith.constant 0 : index
    %30 = vector.load %arg7[%c0_18, %c0_19] : memref<1x128xf32, #tpu.memory_space<vmem>>, vector<1x128xf32>
    %31 = vector.broadcast %30 : vector<1x128xf32> to vector<16x128xf32>
    %32 = arith.addf %29, %31 : vector<16x128xf32>
    %cst_20 = arith.constant 0.000000e+00 : f32
    %33 = vector.broadcast %cst_20 : f32 to vector<16x128xf32>
    %34 = arith.maximumf %32, %33 : vector<16x128xf32>
    %35 = arith.truncf %34 : vector<16x128xf32> to vector<16x128xbf16>
    %c0_21 = arith.constant 0 : index
    %c0_22 = arith.constant 0 : index
    %36 = vector.load %arg8[%c0_21, %c0_22] : memref<128x256xbf16, #tpu.memory_space<vmem>>, vector<128x256xbf16>
    %cst_23 = arith.constant dense<0.000000e+00> : vector<16x256xf32>
    %37 = tpu.matmul %35, %36, %cst_23 {dimension_numbers = #tpu.dot_dimension_numbers<[1], [0], [0], [1], [0, 0, 1, 1], [], []>} : vector<16x128xbf16>, vector<128x256xbf16>, vector<16x256xf32> -> vector<16x256xf32>
    %c0_24 = arith.constant 0 : index
    %c0_25 = arith.constant 0 : index
    %38 = vector.load %arg9[%c0_24, %c0_25] : memref<128x256xbf16, #tpu.memory_space<vmem>>, vector<128x256xbf16>
    %cst_26 = arith.constant dense<0.000000e+00> : vector<16x256xf32>
    %39 = tpu.matmul %0, %38, %cst_26 {dimension_numbers = #tpu.dot_dimension_numbers<[1], [0], [0], [1], [0, 0, 1, 1], [], []>} : vector<16x128xbf16>, vector<128x256xbf16>, vector<16x256xf32> -> vector<16x256xf32>
    %40 = arith.addf %37, %39 : vector<16x256xf32>
    %c0_27 = arith.constant 0 : index
    %c0_28 = arith.constant 0 : index
    %41 = vector.load %arg10[%c0_27, %c0_28] : memref<1x256xf32, #tpu.memory_space<vmem>>, vector<1x256xf32>
    %42 = vector.broadcast %41 : vector<1x256xf32> to vector<16x256xf32>
    %43 = arith.addf %40, %42 : vector<16x256xf32>
    %cst_29 = arith.constant 0.000000e+00 : f32
    %44 = vector.broadcast %cst_29 : f32 to vector<16x256xf32>
    %45 = arith.maximumf %43, %44 : vector<16x256xf32>
    %c0_30 = arith.constant 0 : index
    %c0_31 = arith.constant 0 : index
    %46 = vector.load %arg11[%c0_30, %c0_31] : memref<16x256xf32, #tpu.memory_space<vmem>>, vector<16x256xf32>
    tpu.vector_store %arg11[%c0_30, %c0_31], %45 {strides = array<i32>} : memref<16x256xf32, #tpu.memory_space<vmem>>, vector<16x256xf32>,
    return
  }
  func.func @transform_0(%arg0: i32) -> (i32, i32) {
    %c0_i32 = arith.constant 0 : i32
    %c0_i32_0 = arith.constant 0 : i32
    return %arg0, %c0_i32 : i32, i32
  }
  func.func @transform_1(%arg0: i32) -> (i32, i32) {
    %c0_i32 = arith.constant 0 : i32
    %c0_i32_0 = arith.constant 0 : i32
    %c0_i32_1 = arith.constant 0 : i32
    return %c0_i32, %c0_i32_0 : i32, i32
  }
  func.func @transform_2(%arg0: i32) -> (i32, i32) {
    %c0_i32 = arith.constant 0 : i32
    %c0_i32_0 = arith.constant 0 : i32
    %c0_i32_1 = arith.constant 0 : i32
    return %c0_i32, %c0_i32_0 : i32, i32
  }
  func.func @transform_3(%arg0: i32) -> (i32, i32) {
    %c0_i32 = arith.constant 0 : i32
    %c0_i32_0 = arith.constant 0 : i32
    %c0_i32_1 = arith.constant 0 : i32
    return %c0_i32, %c0_i32_0 : i32, i32
  }
  func.func @transform_4(%arg0: i32) -> (i32, i32) {
    %c0_i32 = arith.constant 0 : i32
    %c0_i32_0 = arith.constant 0 : i32
    %c0_i32_1 = arith.constant 0 : i32
    return %c0_i32, %c0_i32_0 : i32, i32
  }
  func.func @transform_5(%arg0: i32) -> (i32, i32) {
    %c0_i32 = arith.constant 0 : i32
    %c0_i32_0 = arith.constant 0 : i32
    %c0_i32_1 = arith.constant 0 : i32
    return %c0_i32, %c0_i32_0 : i32, i32
  }
  func.func @transform_6(%arg0: i32) -> (i32, i32) {
    %c0_i32 = arith.constant 0 : i32
    %c0_i32_0 = arith.constant 0 : i32
    %c0_i32_1 = arith.constant 0 : i32
    return %c0_i32, %c0_i32_0 : i32, i32
  }
  func.func @transform_7(%arg0: i32) -> (i32, i32) {
    %c0_i32 = arith.constant 0 : i32
    %c0_i32_0 = arith.constant 0 : i32
    %c0_i32_1 = arith.constant 0 : i32
    return %c0_i32, %c0_i32_0 : i32, i32
  }
  func.func @transform_8(%arg0: i32) -> (i32, i32) {
    %c0_i32 = arith.constant 0 : i32
    %c0_i32_0 = arith.constant 0 : i32
    %c0_i32_1 = arith.constant 0 : i32
    return %c0_i32, %c0_i32_0 : i32, i32
  }
  func.func @transform_9(%arg0: i32) -> (i32, i32) {
    %c0_i32 = arith.constant 0 : i32
    %c0_i32_0 = arith.constant 0 : i32
    %c0_i32_1 = arith.constant 0 : i32
    return %c0_i32, %c0_i32_0 : i32, i32
  }
  func.func @transform_10(%arg0: i32) -> (i32, i32) {
    %c0_i32 = arith.constant 0 : i32
    %c0_i32_0 = arith.constant 0 : i32
    return %arg0, %c0_i32 : i32, i32
  }
}

</mosaic_0001>

<llo_original>
// kernel: bottleneck_forward.1
$region0: #{bottleneck_forward.1}
  #allocation0 [shape = 'u32[]', space=smem, size = 0x4, offset = 0x4, fixed_abs, tag = 'smem constant byte address 0x4 - core index']
  #allocation1 [shape = 'u32[144,128]{1,0:T(1,128)}', space=vmem, size = 0x12000, scoped, tag = 'internal scratch']
  %s0 = inlined_call_operand.hbm [shape: bf16[32,128], index: 0, kind: input, shape index: {}]
  %s1 = inlined_call_operand.hbm [shape: bf16[128,128], index: 1, kind: input, shape index: {}]
  %s2 = inlined_call_operand.hbm [shape: f32[1,128], index: 2, kind: input, shape index: {}]
  %s3 = inlined_call_operand.hbm [shape: bf16[128,128], index: 3, kind: input, shape index: {}]
  %s4 = inlined_call_operand.hbm [shape: bf16[128,128], index: 4, kind: input, shape index: {}]
  %s5 = inlined_call_operand.hbm [shape: bf16[128,128], index: 5, kind: input, shape index: {}]
  %s6 = inlined_call_operand.hbm [shape: f32[1,128], index: 6, kind: input, shape index: {}]
  %s7 = inlined_call_operand.hbm [shape: bf16[128,256], index: 7, kind: input, shape index: {}]
  %s8 = inlined_call_operand.hbm [shape: bf16[128,256], index: 8, kind: input, shape index: {}]
  %s9 = inlined_call_operand.hbm [shape: f32[1,256], index: 9, kind: input, shape index: {}]
  %s10 = inlined_call_operand.hbm [shape: f32[32,256], index: 10, kind: output, shape index: {}]
  %s11 = sld [smem:[#allocation0]]
  $region113: #{bottleneck_forward.1} parent=0
    _
  %s13 = ssub.s32 1, %s11
  %s14 = scalar_select 0, %s13, %s11
  $region1: #{bottleneck_forward.1} parent=0
    #allocation2 [shape = 'u8[8192]{0}', space=vmem, size = 0x2000, scoped, tag = 'input window, operand 0']
    #allocation3 [shape = 's32[2]{0}', space=sflag, size = 0x8, scoped, tag = 'scoped memory for bottleneck_forward.1']
    #allocation4 [shape = 's32[2]{0}', space=sflag, size = 0x8, scoped, tag = 'scoped memory for bottleneck_forward.1']
    #allocation5 [shape = 'u8[32768]{0}', space=vmem, size = 0x8000, scoped, tag = 'input window, operand 1, single buffered']
    #allocation6 [shape = 's32[1]{0}', space=sflag, size = 0x4, scoped, tag = 'scoped memory for bottleneck_forward.1']
    #allocation7 [shape = 'u8[512]{0}', space=vmem, size = 0x400, scoped, tag = 'input window, operand 2, single buffered']
    #allocation8 [shape = 'u8[32768]{0}', space=vmem, size = 0x8000, scoped, tag = 'input window, operand 3, single buffered']
    #allocation9 [shape = 's32[1]{0}', space=sflag, size = 0x4, scoped, tag = 'scoped memory for bottleneck_forward.1']
    #allocation10 [shape = 'u8[32768]{0}', space=vmem, size = 0x8000, scoped, tag = 'input window, operand 4, single buffered']
    #allocation11 [shape = 'u8[32768]{0}', space=vmem, size = 0x8000, scoped, tag = 'input window, operand 5, single buffered']
    #allocation12 [shape = 's32[1]{0}', space=sflag, size = 0x4, scoped, tag = 'scoped memory for bottleneck_forward.1']
    #allocation13 [shape = 'u8[512]{0}', space=vmem, size = 0x400, scoped, tag = 'input window, operand 6, single buffered']
    #allocation14 [shape = 'u8[65536]{0}', space=vmem, size = 0x10000, scoped, tag = 'input window, operand 7, single buffered']
    #allocation15 [shape = 's32[1]{0}', space=sflag, size = 0x4, scoped, tag = 'scoped memory for bottleneck_forward.1']
    #allocation16 [shape = 'u8[65536]{0}', space=vmem, size = 0x10000, scoped, tag = 'input window, operand 8, single buffered']
    #allocation17 [shape = 'u8[1024]{0}', space=vmem, size = 0x400, scoped, tag = 'input window, operand 9, single buffered']
    #allocation18 [shape = 's32[1]{0}', space=sflag, size = 0x4, scoped, tag = 'scoped memory for bottleneck_forward.1']
    #allocation19 [shape = 'u8[32768]{0}', space=vmem, size = 0x8000, scoped, tag = 'output window, operand 0']
    %15 = vsyncpa [#allocation3], 0
    %s16 = scalar_lea.sflag [#allocation3], 1
    %17 = vsyncpa %s16, 0
    %18 = vsyncpa [#allocation6], 0
    %19 = vsyncpa [#allocation9], 0
    %20 = vsyncpa [#allocation12], 0
    %21 = vsyncpa [#allocation15], 0
    %22 = vsyncpa [#allocation18], 0
    %23 = vsyncpa [#allocation4], 0
    %s24 = scalar_lea.sflag [#allocation4], 1
    %25 = vsyncpa %s24, 0
    loop: start=0, step=1, limit=4
    $region2: #{bottleneck_forward.1} parent=1 // loop_pre_header
      _
    $region3: #{bottleneck_forward.1} parent=1 // loop_header
      %s27 = sphi 0, %s31
      %p28 = scmp.ge.s32.totalorder %s27, 4
      %s37 = sphi 0, %s39
      %s40 = sphi 0, %s37
      %s41 = sphi 0, %s40
      %s57 = sphi 0, %s41
      %s61 = sphi 0, %s61
      %s63 = sphi 0, %s61
      %s64 = sphi 0, %s63
      %s78 = sphi 0, %s64
      %s82 = sphi 0, %s82
      %s84 = sphi 0, %s82
      %s85 = sphi 0, %s84
      %s99 = sphi 0, %s85
      %s103 = sphi 0, %s103
      %s105 = sphi 0, %s103
      %s106 = sphi 0, %s105
      %s120 = sphi 0, %s106
      %s124 = sphi 0, %s124
      %s126 = sphi 0, %s124
      %s127 = sphi 0, %s126
      %s141 = sphi 0, %s127
      %s145 = sphi 0, %s145
      %s147 = sphi 0, %s145
      %s148 = sphi 0, %s147
      %s162 = sphi 0, %s148
      %s166 = sphi 0, %s166
      %s168 = sphi 0, %s166
      %s169 = sphi 0, %s168
      %s183 = sphi 0, %s169
      %s187 = sphi 0, %s187
      %s189 = sphi 0, %s187
      %s190 = sphi 0, %s189
      %s204 = sphi 0, %s190
      %s208 = sphi 0, %s208
      %s210 = sphi 0, %s208
      %s211 = sphi 0, %s210
      %s225 = sphi 0, %s211
      %s229 = sphi 0, %s229
      %s231 = sphi 0, %s229
      %s232 = sphi 0, %s231
      %s246 = sphi 0, %s232
      %s252 = sphi 0, %s254
      %s255 = sphi 0, %s252
      %s256 = sphi 0, %s255
      %s272 = sphi 0, %s256
    $region4: #{bottleneck_forward.1} parent=1 // loop_header_branch
      %30 = sbr.rel (%p28) target = $region8
    $region5: #{bottleneck_forward.1} parent=1 // loop_body
      %s32 = ssub.s32 %s27, 1
      %s33 = ssub.s32 %s27, 2
      %s34 = sadd.s32 %s27, 1
      %s35 = ssub.s32 %s27, %s34
      %p36 = scmp.eq.s32.totalorder %s35, 0
      %s38 = sadd.s32 %s37, 1
      %s39 = scalar_select %p36, %s37, %s38
      %p42 = pneg %p36
      %p43 = scmp.eq.s32.totalorder %s27, 1
      %p44 = por %p42, %p43
      %p45 = scmp.ne.s32.totalorder %s37, %s40
      %p46 = scmp.eq.s32.totalorder %s27, 0
      %p47 = por %p45, %p46
      %p48 = scmp.ne.s32.totalorder %s37, %s40
      %p49 = scmp.eq.s32.totalorder %s32, 1
      %p50 = por %p48, %p49
      %p51 = scmp.ne.s32.totalorder %s40, %s41
      %p52 = scmp.eq.s32.totalorder %s32, 0
      %p53 = por %p51, %p52
      %p54 = scmp.ne.s32.totalorder %s40, %s41
      %p55 = scmp.eq.s32.totalorder %s33, 1
      %p56 = por %p54, %p55
      %p58 = scmp.ne.s32.totalorder %s41, %s57
      %p59 = scmp.eq.s32.totalorder %s33, 0
      %p60 = por %p58, %p59
      %s62 = sadd.s32 %s61, 1
      %p65 = scmp.eq.s32.totalorder %s27, 1
      %p66 = scmp.ne.s32.totalorder %s61, %s63
      %p67 = scmp.eq.s32.totalorder %s27, 0
      %p68 = por %p66, %p67
      %p69 = scmp.ne.s32.totalorder %s61, %s63
      %p70 = scmp.eq.s32.totalorder %s32, 1
      %p71 = por %p69, %p70
      %p72 = scmp.ne.s32.totalorder %s63, %s64
      %p73 = scmp.eq.s32.totalorder %s32, 0
      %p74 = por %p72, %p73
      %p75 = scmp.ne.s32.totalorder %s63, %s64
      %p76 = scmp.eq.s32.totalorder %s33, 1
      %p77 = por %p75, %p76
      %p79 = scmp.ne.s32.totalorder %s64, %s78
      %p80 = scmp.eq.s32.totalorder %s33, 0
      %p81 = por %p79, %p80
      %s83 = sadd.s32 %s82, 1
      %p86 = scmp.eq.s32.totalorder %s27, 1
      %p87 = scmp.ne.s32.totalorder %s82, %s84
      %p88 = scmp.eq.s32.totalorder %s27, 0
      %p89 = por %p87, %p88
      %p90 = scmp.ne.s32.totalorder %s82, %s84
      %p91 = scmp.eq.s32.totalorder %s32, 1
      %p92 = por %p90, %p91
      %p93 = scmp.ne.s32.totalorder %s84, %s85
      %p94 = scmp.eq.s32.totalorder %s32, 0
      %p95 = por %p93, %p94
      %p96 = scmp.ne.s32.totalorder %s84, %s85
      %p97 = scmp.eq.s32.totalorder %s33, 1
      %p98 = por %p96, %p97
      %p100 = scmp.ne.s32.totalorder %s85, %s99
      %p101 = scmp.eq.s32.totalorder %s33, 0
      %p102 = por %p100, %p101
      %s104 = sadd.s32 %s103, 1
      %p107 = scmp.eq.s32.totalorder %s27, 1
      %p108 = scmp.ne.s32.totalorder %s103, %s105
      %p109 = scmp.eq.s32.totalorder %s27, 0
      %p110 = por %p108, %p109
      %p111 = scmp.ne.s32.totalorder %s103, %s105
      %p112 = scmp.eq.s32.totalorder %s32, 1
      %p113 = por %p111, %p112
      %p114 = scmp.ne.s32.totalorder %s105, %s106
      %p115 = scmp.eq.s32.totalorder %s32, 0
      %p116 = por %p114, %p115
      %p117 = scmp.ne.s32.totalorder %s105, %s106
      %p118 = scmp.eq.s32.totalorder %s33, 1
      %p119 = por %p117, %p118
      %p121 = scmp.ne.s32.totalorder %s106, %s120
      %p122 = scmp.eq.s32.totalorder %s33, 0
      %p123 = por %p121, %p122
      %s125 = sadd.s32 %s124, 1
      %p128 = scmp.eq.s32.totalorder %s27, 1
      %p129 = scmp.ne.s32.totalorder %s124, %s126
      %p130 = scmp.eq.s32.totalorder %s27, 0
      %p131 = por %p129, %p130
      %p132 = scmp.ne.s32.totalorder %s124, %s126
      %p133 = scmp.eq.s32.totalorder %s32, 1
      %p134 = por %p132, %p133
      %p135 = scmp.ne.s32.totalorder %s126, %s127
      %p136 = scmp.eq.s32.totalorder %s32, 0
      %p137 = por %p135, %p136
      %p138 = scmp.ne.s32.totalorder %s126, %s127
      %p139 = scmp.eq.s32.totalorder %s33, 1
      %p140 = por %p138, %p139
      %p142 = scmp.ne.s32.totalorder %s127, %s141
      %p143 = scmp.eq.s32.totalorder %s33, 0
      %p144 = por %p142, %p143
      %s146 = sadd.s32 %s145, 1
      %p149 = scmp.eq.s32.totalorder %s27, 1
      %p150 = scmp.ne.s32.totalorder %s145, %s147
      %p151 = scmp.eq.s32.totalorder %s27, 0
      %p152 = por %p150, %p151
      %p153 = scmp.ne.s32.totalorder %s145, %s147
      %p154 = scmp.eq.s32.totalorder %s32, 1
      %p155 = por %p153, %p154
      %p156 = scmp.ne.s32.totalorder %s147, %s148
      %p157 = scmp.eq.s32.totalorder %s32, 0
      %p158 = por %p156, %p157
      %p159 = scmp.ne.s32.totalorder %s147, %s148
      %p160 = scmp.eq.s32.totalorder %s33, 1
      %p161 = por %p159, %p160
      %p163 = scmp.ne.s32.totalorder %s148, %s162
      %p164 = scmp.eq.s32.totalorder %s33, 0
      %p165 = por %p163, %p164
      %s167 = sadd.s32 %s166, 1
      %p170 = scmp.eq.s32.totalorder %s27, 1
      %p171 = scmp.ne.s32.totalorder %s166, %s168
      %p172 = scmp.eq.s32.totalorder %s27, 0
      %p173 = por %p171, %p172
      %p174 = scmp.ne.s32.totalorder %s166, %s168
      %p175 = scmp.eq.s32.totalorder %s32, 1
      %p176 = por %p174, %p175
      %p177 = scmp.ne.s32.totalorder %s168, %s169
      %p178 = scmp.eq.s32.totalorder %s32, 0
      %p179 = por %p177, %p178
      %p180 = scmp.ne.s32.totalorder %s168, %s169
      %p181 = scmp.eq.s32.totalorder %s33, 1
      %p182 = por %p180, %p181
      %p184 = scmp.ne.s32.totalorder %s169, %s183
      %p185 = scmp.eq.s32.totalorder %s33, 0
      %p186 = por %p184, %p185
      %s188 = sadd.s32 %s187, 1
      %p191 = scmp.eq.s32.totalorder %s27, 1
      %p192 = scmp.ne.s32.totalorder %s187, %s189
      %p193 = scmp.eq.s32.totalorder %s27, 0
      %p194 = por %p192, %p193
      %p195 = scmp.ne.s32.totalorder %s187, %s189
      %p196 = scmp.eq.s32.totalorder %s32, 1
      %p197 = por %p195, %p196
      %p198 = scmp.ne.s32.totalorder %s189, %s190
      %p199 = scmp.eq.s32.totalorder %s32, 0
      %p200 = por %p198, %p199
      %p201 = scmp.ne.s32.totalorder %s189, %s190
      %p202 = scmp.eq.s32.totalorder %s33, 1
      %p203 = por %p201, %p202
      %p205 = scmp.ne.s32.totalorder %s190, %s204
      %p206 = scmp.eq.s32.totalorder %s33, 0
      %p207 = por %p205, %p206
      %s209 = sadd.s32 %s208, 1
      %p212 = scmp.eq.s32.totalorder %s27, 1
      %p213 = scmp.ne.s32.totalorder %s208, %s210
      %p214 = scmp.eq.s32.totalorder %s27, 0
      %p215 = por %p213, %p214
      %p216 = scmp.ne.s32.totalorder %s208, %s210
      %p217 = scmp.eq.s32.totalorder %s32, 1
      %p218 = por %p216, %p217
      %p219 = scmp.ne.s32.totalorder %s210, %s211
      %p220 = scmp.eq.s32.totalorder %s32, 0
      %p221 = por %p219, %p220
      %p222 = scmp.ne.s32.totalorder %s210, %s211
      %p223 = scmp.eq.s32.totalorder %s33, 1
      %p224 = por %p222, %p223
      %p226 = scmp.ne.s32.totalorder %s211, %s225
      %p227 = scmp.eq.s32.totalorder %s33, 0
      %p228 = por %p226, %p227
      %s230 = sadd.s32 %s229, 1
      %p233 = scmp.eq.s32.totalorder %s27, 1
      %p234 = scmp.ne.s32.totalorder %s229, %s231
      %p235 = scmp.eq.s32.totalorder %s27, 0
      %p236 = por %p234, %p235
      %p237 = scmp.ne.s32.totalorder %s229, %s231
      %p238 = scmp.eq.s32.totalorder %s32, 1
      %p239 = por %p237, %p238
      %p240 = scmp.ne.s32.totalorder %s231, %s232
      %p241 = scmp.eq.s32.totalorder %s32, 0
      %p242 = por %p240, %p241
      %p243 = scmp.ne.s32.totalorder %s231, %s232
      %p244 = scmp.eq.s32.totalorder %s33, 1
      %p245 = por %p243, %p244
      %p247 = scmp.ne.s32.totalorder %s232, %s246
      %p248 = scmp.eq.s32.totalorder %s33, 0
      %p249 = por %p247, %p248
      %s250 = ssub.s32 %s27, %s34
      %p251 = scmp.eq.s32.totalorder %s250, 0
      %s253 = sadd.s32 %s252, 1
      %s254 = scalar_select %p251, %s252, %s253
      %p257 = pneg %p251
      %p258 = scmp.eq.s32.totalorder %s27, 1
      %p259 = por %p257, %p258
      %p260 = scmp.ne.s32.totalorder %s252, %s255
      %p261 = scmp.eq.s32.totalorder %s27, 0
      %p262 = por %p260, %p261
      %p263 = scmp.ne.s32.totalorder %s252, %s255
      %p264 = scmp.eq.s32.totalorder %s32, 1
      %p265 = por %p263, %p264
      %p266 = scmp.ne.s32.totalorder %s255, %s256
      %p267 = scmp.eq.s32.totalorder %s32, 0
      %p268 = por %p266, %p267
      %p269 = scmp.ne.s32.totalorder %s255, %s256
      %p270 = scmp.eq.s32.totalorder %s33, 1
      %p271 = por %p269, %p270
      %p273 = scmp.ne.s32.totalorder %s256, %s272
      %p274 = scmp.eq.s32.totalorder %s33, 0
      %p275 = por %p273, %p274
      %p276 = scmp.le.s32.totalorder 1, %s27
      %p277 = scmp.lt.s32.totalorder %s27, 3
      %p278 = pnand %p276, %p277
      %p279 = pneg %p278
      // Predicated region
      $region9: #{bottleneck_forward.1} parent=5 // pred_check
        _
      $region10: #{bottleneck_forward.1} parent=5 // pred_check_branch
        %281 = sbr.rel (%p278) target = $region12
      $region11: #{bottleneck_forward.1} parent=5 // pred_region
        %s282 = ssub.s32 %s27, 1
        // Predicated region
        $region13: #{bottleneck_forward.1} parent=11 // pred_check
          %p283 = pneg %p74
        $region14: #{bottleneck_forward.1} parent=11 // pred_check_branch
          %285 = sbr.rel (%p283) target = $region16
        $region15: #{bottleneck_forward.1} parent=11 // pred_region
          %s287 = ssub.s32 1024, 1024
          %288 = vsyncadd [#allocation6], %s287
          %s289 = sshll.u32 [#allocation5], 4
          %s290 = int_to_ptr.vmem [resolvable:$true] %s289
          %295 = dma.hbm_to_vmem [thread:$0]  %s1, 1024, %s290, [#allocation6], 64, 64, 4
        $region16: #{bottleneck_forward.1} parent=11 // pred_fallthru
          _
        // Predicated region
        $region17: #{bottleneck_forward.1} parent=11 // pred_check
          %p296 = pneg %p95
        $region18: #{bottleneck_forward.1} parent=11 // pred_check_branch
          %298 = sbr.rel (%p296) target = $region20
        $region19: #{bottleneck_forward.1} parent=11 // pred_region
          %s300 = ssub.s32 16, 16
          %301 = vsyncadd [#allocation6], %s300
          %s303 = sshll.u32 [#allocation7], 4
          %s304 = int_to_ptr.vmem [resolvable:$true] %s303
          %306 = dma.hbm_to_vmem [thread:$0]  %s2, 16, %s304, [#allocation6]
        $region20: #{bottleneck_forward.1} parent=11 // pred_fallthru
          _
        // Predicated region
        $region21: #{bottleneck_forward.1} parent=11 // pred_check
          %p307 = pneg %p116
        $region22: #{bottleneck_forward.1} parent=11 // pred_check_branch
          %309 = sbr.rel (%p307) target = $region24
        $region23: #{bottleneck_forward.1} parent=11 // pred_region
          %s311 = ssub.s32 1024, 1024
          %312 = vsyncadd [#allocation9], %s311
          %s313 = sshll.u32 [#allocation8], 4
          %s314 = int_to_ptr.vmem [resolvable:$true] %s313
          %319 = dma.hbm_to_vmem [thread:$0]  %s3, 1024, %s314, [#allocation9], 64, 64, 4
        $region24: #{bottleneck_forward.1} parent=11 // pred_fallthru
          _
        // Predicated region
        $region25: #{bottleneck_forward.1} parent=11 // pred_check
          %p320 = pneg %p137
        $region26: #{bottleneck_forward.1} parent=11 // pred_check_branch
          %322 = sbr.rel (%p320) target = $region28
        $region27: #{bottleneck_forward.1} parent=11 // pred_region
          %s324 = ssub.s32 1024, 1024
          %325 = vsyncadd [#allocation9], %s324
          %s326 = sshll.u32 [#allocation10], 4
          %s327 = int_to_ptr.vmem [resolvable:$true] %s326
          %332 = dma.hbm_to_vmem [thread:$0]  %s4, 1024, %s327, [#allocation9], 64, 64, 4
        $region28: #{bottleneck_forward.1} parent=11 // pred_fallthru
          _
        // Predicated region
        $region29: #{bottleneck_forward.1} parent=11 // pred_check
          %p333 = pneg %p158
        $region30: #{bottleneck_forward.1} parent=11 // pred_check_branch
          %335 = sbr.rel (%p333) target = $region32
        $region31: #{bottleneck_forward.1} parent=11 // pred_region
          %s337 = ssub.s32 1024, 1024
          %338 = vsyncadd [#allocation12], %s337
          %s339 = sshll.u32 [#allocation11], 4
          %s340 = int_to_ptr.vmem [resolvable:$true] %s339
          %345 = dma.hbm_to_vmem [thread:$0]  %s5, 1024, %s340, [#allocation12], 64, 64, 4
        $region32: #{bottleneck_forward.1} parent=11 // pred_fallthru
          _
        // Predicated region
        $region33: #{bottleneck_forward.1} parent=11 // pred_check
          %p346 = pneg %p179
        $region34: #{bottleneck_forward.1} parent=11 // pred_check_branch
          %348 = sbr.rel (%p346) target = $region36
        $region35: #{bottleneck_forward.1} parent=11 // pred_region
          %s350 = ssub.s32 16, 16
          %351 = vsyncadd [#allocation12], %s350
          %s353 = sshll.u32 [#allocation13], 4
          %s354 = int_to_ptr.vmem [resolvable:$true] %s353
          %356 = dma.hbm_to_vmem [thread:$0]  %s6, 16, %s354, [#allocation12]
        $region36: #{bottleneck_forward.1} parent=11 // pred_fallthru
          _
        // Predicated region
        $region37: #{bottleneck_forward.1} parent=11 // pred_check
          %p357 = pneg %p200
        $region38: #{bottleneck_forward.1} parent=11 // pred_check_branch
          %359 = sbr.rel (%p357) target = $region40
        $region39: #{bottleneck_forward.1} parent=11 // pred_region
          %s361 = ssub.s32 2048, 2048
          %362 = vsyncadd [#allocation15], %s361
          %s363 = sshll.u32 [#allocation14], 4
          %s364 = int_to_ptr.vmem [resolvable:$true] %s363
          %369 = dma.hbm_to_vmem [thread:$0]  %s7, 2048, %s364, [#allocation15], 128, 128, 8
        $region40: #{bottleneck_forward.1} parent=11 // pred_fallthru
          _
        // Predicated region
        $region41: #{bottleneck_forward.1} parent=11 // pred_check
          %p370 = pneg %p221
        $region42: #{bottleneck_forward.1} parent=11 // pred_check_branch
          %372 = sbr.rel (%p370) target = $region44
        $region43: #{bottleneck_forward.1} parent=11 // pred_region
          %s374 = ssub.s32 2048, 2048
          %375 = vsyncadd [#allocation15], %s374
          %s376 = sshll.u32 [#allocation16], 4
          %s377 = int_to_ptr.vmem [resolvable:$true] %s376
          %382 = dma.hbm_to_vmem [thread:$0]  %s8, 2048, %s377, [#allocation15], 128, 128, 8
        $region44: #{bottleneck_forward.1} parent=11 // pred_fallthru
          _
        // Predicated region
        $region45: #{bottleneck_forward.1} parent=11 // pred_check
          %p383 = pneg %p242
        $region46: #{bottleneck_forward.1} parent=11 // pred_check_branch
          %385 = sbr.rel (%p383) target = $region48
        $region47: #{bottleneck_forward.1} parent=11 // pred_region
          %s387 = ssub.s32 32, 32
          %388 = vsyncadd [#allocation18], %s387
          %s390 = sshll.u32 [#allocation17], 4
          %s391 = int_to_ptr.vmem [resolvable:$true] %s390
          %393 = dma.hbm_to_vmem [thread:$0]  %s9, 32, %s391, [#allocation18]
        $region48: #{bottleneck_forward.1} parent=11 // pred_fallthru
          _
      $region12: #{bottleneck_forward.1} parent=5 // pred_fallthru
        _
      %p394 = scmp.lt.s32.totalorder %s27, 2
      // Predicated region
      $region49: #{bottleneck_forward.1} parent=5 // pred_check
        %p395 = pneg %p394
      $region50: #{bottleneck_forward.1} parent=5 // pred_check_branch
        %397 = sbr.rel (%p395) target = $region52
      $region51: #{bottleneck_forward.1} parent=5 // pred_region
        // Predicated region
        $region53: #{bottleneck_forward.1} parent=51 // pred_check
          %p398 = pneg %p47
        $region54: #{bottleneck_forward.1} parent=51 // pred_check_branch
          %400 = sbr.rel (%p398) target = $region56
        $region55: #{bottleneck_forward.1} parent=51 // pred_region
          %s401 = sand.u32 %s37, 1
          %s402 = scalar_lea.sflag [#allocation3], %s401
          %s403 = sand.u32 %s37, 1
          %s404 = smul.addr %s403, 8
          %s405 = scalar_lea.vmem [#allocation2], %s404
          %s406 = smul.u32 2, %s27
          %s408 = ssub.s32 128, 128
          %409 = vsyncadd %s402, %s408
          %s410 = smul.addr %s406, 64
          %s411 = scalar_lea.hbm %s0, %s410
          %s412 = sshll.u32 %s405, 4
          %s413 = int_to_ptr.vmem [resolvable:$true] %s412
          %418 = dma.hbm_to_vmem [thread:$0]  %s411, 128, %s413, %s402, 64, 64, 4
        $region56: #{bottleneck_forward.1} parent=51 // pred_fallthru
          _
      $region52: #{bottleneck_forward.1} parent=5 // pred_fallthru
        _
      %p419 = scmp.le.s32.totalorder 1, %s27
      %p420 = scmp.lt.s32.totalorder %s27, 3
      %p421 = pnand %p419, %p420
      %p422 = pneg %p421
      // Predicated region
      $region57: #{bottleneck_forward.1} parent=5 // pred_check
        _
      $region58: #{bottleneck_forward.1} parent=5 // pred_check_branch
        %424 = sbr.rel (%p421) target = $region60
      $region59: #{bottleneck_forward.1} parent=5 // pred_region
        %s425 = ssub.s32 %s27, 1
        %s426 = sand.u32 %s40, 1
        %s427 = scalar_lea.sflag [#allocation3], %s426
        %s428 = sand.u32 %s40, 1
        %s429 = smul.addr %s428, 8
        %s430 = scalar_lea.vmem [#allocation2], %s429
        // Predicated region
        $region61: #{bottleneck_forward.1} parent=59 // pred_check
          %p431 = pneg %p53
        $region62: #{bottleneck_forward.1} parent=59 // pred_check_branch
          %433 = sbr.rel (%p431) target = $region64
        $region63: #{bottleneck_forward.1} parent=59 // pred_region
          %434 = dma.done %s427, 128
        $region64: #{bottleneck_forward.1} parent=59 // pred_fallthru
          _
        // Predicated region
        $region65: #{bottleneck_forward.1} parent=59 // pred_check
          %p435 = pneg %p74
        $region66: #{bottleneck_forward.1} parent=59 // pred_check_branch
          %437 = sbr.rel (%p435) target = $region68
        $region67: #{bottleneck_forward.1} parent=59 // pred_region
          %438 = dma.done [#allocation6], 1024
        $region68: #{bottleneck_forward.1} parent=59 // pred_fallthru
          _
        // Predicated region
        $region69: #{bottleneck_forward.1} parent=59 // pred_check
          %p439 = pneg %p95
        $region70: #{bottleneck_forward.1} parent=59 // pred_check_branch
          %441 = sbr.rel (%p439) target = $region72
        $region71: #{bottleneck_forward.1} parent=59 // pred_region
          %442 = dma.done [#allocation6], 16
        $region72: #{bottleneck_forward.1} parent=59 // pred_fallthru
          _
        // Predicated region
        $region73: #{bottleneck_forward.1} parent=59 // pred_check
          %p443 = pneg %p116
        $region74: #{bottleneck_forward.1} parent=59 // pred_check_branch
          %445 = sbr.rel (%p443) target = $region76
        $region75: #{bottleneck_forward.1} parent=59 // pred_region
          %446 = dma.done [#allocation9], 1024
        $region76: #{bottleneck_forward.1} parent=59 // pred_fallthru
          _
        // Predicated region
        $region77: #{bottleneck_forward.1} parent=59 // pred_check
          %p447 = pneg %p137
        $region78: #{bottleneck_forward.1} parent=59 // pred_check_branch
          %449 = sbr.rel (%p447) target = $region80
        $region79: #{bottleneck_forward.1} parent=59 // pred_region
          %450 = dma.done [#allocation9], 1024
        $region80: #{bottleneck_forward.1} parent=59 // pred_fallthru
          _
        // Predicated region
        $region81: #{bottleneck_forward.1} parent=59 // pred_check
          %p451 = pneg %p158
        $region82: #{bottleneck_forward.1} parent=59 // pred_check_branch
          %453 = sbr.rel (%p451) target = $region84
        $region83: #{bottleneck_forward.1} parent=59 // pred_region
          %454 = dma.done [#allocation12], 1024
        $region84: #{bottleneck_forward.1} parent=59 // pred_fallthru
          _
        // Predicated region
        $region85: #{bottleneck_forward.1} parent=59 // pred_check
          %p455 = pneg %p179
        $region86: #{bottleneck_forward.1} parent=59 // pred_check_branch
          %457 = sbr.rel (%p455) target = $region88
        $region87: #{bottleneck_forward.1} parent=59 // pred_region
          %458 = dma.done [#allocation12], 16
        $region88: #{bottleneck_forward.1} parent=59 // pred_fallthru
          _
        // Predicated region
        $region89: #{bottleneck_forward.1} parent=59 // pred_check
          %p459 = pneg %p200
        $region90: #{bottleneck_forward.1} parent=59 // pred_check_branch
          %461 = sbr.rel (%p459) target = $region92
        $region91: #{bottleneck_forward.1} parent=59 // pred_region
          %462 = dma.done [#allocation15], 2048
        $region92: #{bottleneck_forward.1} parent=59 // pred_fallthru
          _
        // Predicated region
        $region93: #{bottleneck_forward.1} parent=59 // pred_check
          %p463 = pneg %p221
        $region94: #{bottleneck_forward.1} parent=59 // pred_check_branch
          %465 = sbr.rel (%p463) target = $region96
        $region95: #{bottleneck_forward.1} parent=59 // pred_region
          %466 = dma.done [#allocation15], 2048
        $region96: #{bottleneck_forward.1} parent=59 // pred_fallthru
          _
        // Predicated region
        $region97: #{bottleneck_forward.1} parent=59 // pred_check
          %p467 = pneg %p242
        $region98: #{bottleneck_forward.1} parent=59 // pred_check_branch
          %469 = sbr.rel (%p467) target = $region100
        $region99: #{bottleneck_forward.1} parent=59 // pred_region
          %470 = dma.done [#allocation18], 32
        $region100: #{bottleneck_forward.1} parent=59 // pred_fallthru
          _
        %s471 = sand.u32 %s40, 1
        %s472 = scalar_lea.sflag [#allocation3], %s471
        %s473 = sand.u32 %s40, 1
        %s474 = smul.addr %s473, 8
        %s475 = scalar_lea.vmem [#allocation2], %s474
        %p476 = pneg %p53
        %p477 = pneg %p50
        %p478 = pneg %p74
        %p479 = pneg %p71
        %p480 = pneg %p95
        %p481 = pneg %p92
        %p482 = pneg %p116
        %p483 = pneg %p113
        %p484 = pneg %p137
        %p485 = pneg %p134
        %p486 = pneg %p158
        %p487 = pneg %p155
        %p488 = pneg %p179
        %p489 = pneg %p176
        %p490 = pneg %p200
        %p491 = pneg %p197
        %p492 = pneg %p221
        %p493 = pneg %p218
        %p494 = pneg %p242
        %p495 = pneg %p239
        %p496 = pneg %p268
        %p497 = pneg %p265
        %s498 = sand.u32 %s255, 1
        %s499 = scalar_lea.sflag [#allocation4], %s498
        %s500 = sand.u32 %s255, 1
        %s501 = smul.addr %s500, 32
        %s502 = scalar_lea.vmem [#allocation19], %s501
        %s503 = smul.u32 2, %s32
        %s504 = smul.u32 2, %s32
        %v506 = vld [vmem:[%s430] sm:$0xf]
        %v507 = vld [vmem:[%s430 + $0x4] sm:$0xf]
        %v508 = vld [vmem:[#allocation5] sm:$0xf]
        %v509 = vld [vmem:[#allocation5 + $0x4] sm:$0xf]
        %v510 = vld [vmem:[#allocation5 + $0x8] sm:$0xf]
        %v511 = vld [vmem:[#allocation5 + $0xc] sm:$0xf]
        %v512 = vld [vmem:[#allocation5 + $0x10] sm:$0xf]
        %v513 = vld [vmem:[#allocation5 + $0x14] sm:$0xf]
        %v514 = vld [vmem:[#allocation5 + $0x18] sm:$0xf]
        %v515 = vld [vmem:[#allocation5 + $0x1c] sm:$0xf]
        %v516 = vld [vmem:[#allocation5 + $0x20] sm:$0xf]
        %v517 = vld [vmem:[#allocation5 + $0x24] sm:$0xf]
        %v518 = vld [vmem:[#allocation5 + $0x28] sm:$0xf]
        %v519 = vld [vmem:[#allocation5 + $0x2c] sm:$0xf]
        %v520 = vld [vmem:[#allocation5 + $0x30] sm:$0xf]
        %v521 = vld [vmem:[#allocation5 + $0x34] sm:$0xf]
        %v522 = vld [vmem:[#allocation5 + $0x38] sm:$0xf]
        %v523 = vld [vmem:[#allocation5 + $0x3c] sm:$0xf]
        %v524 = vld [vmem:[#allocation7] sm:$0x1]
        %v526 = vlaneseq
        %v527 = vshrl.u32 %v526, 7
        %v528 = vsub.s32 0, %v527
        %v529 = vrot.slane %v524, %v528
        %v533 = vunpack.c.l.b16 %v506
        %v534 = vunpack.c.l.b16 %v507
        %v535 = vpack.c.b16 %v534, %v533
        %v553 = vunpack.c.l.b16 %v508
        %v554 = vunpack.c.l.b16 %v509
        %v555 = vunpack.c.l.b16 %v510
        %v556 = vunpack.c.l.b16 %v511
        %v557 = vunpack.c.l.b16 %v512
        %v558 = vunpack.c.l.b16 %v513
        %v559 = vunpack.c.l.b16 %v514
        %v560 = vunpack.c.l.b16 %v515
        %v561 = vunpack.c.l.b16 %v516
        %v562 = vunpack.c.l.b16 %v517
        %v563 = vunpack.c.l.b16 %v518
        %v564 = vunpack.c.l.b16 %v519
        %v565 = vunpack.c.l.b16 %v520
        %v566 = vunpack.c.l.b16 %v521
        %v567 = vunpack.c.l.b16 %v522
        %v568 = vunpack.c.l.b16 %v523
        %v569 = vpack.c.b16 %v554, %v553
        %v570 = vpack.c.b16 %v556, %v555
        %v571 = vpack.c.b16 %v558, %v557
        %v572 = vpack.c.b16 %v560, %v559
        %v573 = vpack.c.b16 %v562, %v561
        %v574 = vpack.c.b16 %v564, %v563
        %v575 = vpack.c.b16 %v566, %v565
        %v576 = vpack.c.b16 %v568, %v567
        %585 = vmatprep.subr.bf16.mxu0 0
        %586 = vmatpush1.bf16.msra.mxu0 %v569
        %587 = vmatprep.subr.bf16.mxu0 0
        %588 = vmatpush1.bf16.msra.mxu0 %v570
        %589 = vmatprep.subr.bf16.mxu0 0
        %590 = vmatpush1.bf16.msra.mxu0 %v571
        %591 = vmatprep.subr.bf16.mxu0 0
        %592 = vmatpush1.bf16.msra.mxu0 %v572
        %593 = vmatprep.subr.bf16.mxu0 0
        %594 = vmatpush1.bf16.msra.mxu0 %v573
        %595 = vmatprep.subr.bf16.mxu0 0
        %596 = vmatpush1.bf16.msra.mxu0 %v574
        %597 = vmatprep.subr.bf16.mxu0 0
        %598 = vmatpush1.bf16.msra.mxu0 %v575
        %599 = vmatprep.subr.bf16.mxu0 0
        %600 = vmatpush1.bf16.msra.mxu0 %v576
        %601 = vmatprep.subr.bf16.mxu0 0
        %602 = vmatpush1.bf16.msra.mxu0 0
        %603 = vmatprep.subr.bf16.mxu0 0
        %604 = vmatpush1.bf16.msra.mxu0 0
        %605 = vmatprep.subr.bf16.mxu0 0
        %606 = vmatpush1.bf16.msra.mxu0 0
        %607 = vmatprep.subr.bf16.mxu0 0
        %608 = vmatpush1.bf16.msra.mxu0 0
        %609 = vmatprep.subr.bf16.mxu0 0
        %610 = vmatpush1.bf16.msra.mxu0 0
        %611 = vmatprep.subr.bf16.mxu0 0
        %612 = vmatpush1.bf16.msra.mxu0 0
        %613 = vmatprep.subr.bf16.mxu0 0
        %614 = vmatpush1.bf16.msra.mxu0 0
        %615 = vmatprep.subr.bf16.mxu0 0
        %616 = vmatpush1.bf16.msra.mxu0 0
        %617 = vmatprep.mubr.bf16.mxu0 0
        %618 = vmatmul.mubr.bf16.gmra.mrb[0].mxu0 %v535
        %v619 = vpop.f32.mrb[0].mxu0
        %v620 = vadd.f32 %v529, %v619
        %v621 = vpop.f32.mrb[0].mxu0
        %v622 = vpop.f32.mrb[0].mxu0
        %v623 = vadd.f32 %v529, %v622
        %v624 = vpop.f32.mrb[0].mxu0
        %625 = vdwg.mxu0
        %v626 = vmax.f32 %v620, 0.0
        %v627 = vmax.f32 %v623, 0.0
        %v628 = vlaneseq
        %v629 = vshrl.u32 %v628, 7
        %v630 = vadd.s32 %v629, 8
        %vm631 = vcmp.ne.s32.totalorder %v629, 0
        %vm632 = vcmp.ne.s32.totalorder %v630, 0
        %v633 = vrot.slane %v626, 7
        %v634 = vrot.slane %v627, 7
        %vm635 = vcmp.lt.s32.totalorder %v629, 1
        %v636 = vsel %vm635, %v633, %v634
        %v637 = vsel %vm635, %v634, %v633
        %v638 = vsel %vm631, %v637, 0.0
        %v639 = vsel %vm632, %v636, 0.0
        %vm640 = vcmp.ne.s32.totalorder %v629, 15
        %vm641 = vcmp.ne.s32.totalorder %v630, 15
        %v642 = vrot.slane %v626, 1
        %v643 = vrot.slane %v627, 1
        %vm644 = vcmp.lt.s32.totalorder %v629, 7
        %v645 = vsel %vm644, %v642, %v643
        %v646 = vsel %vm644, %v643, %v642
        %v647 = vsel %vm640, %v645, 0.0
        %v648 = vsel %vm641, %v646, 0.0
        %v649 = vpack.c.bf16 %v627, %v626
        %v650 = vpack.c.bf16 %v639, %v638
        %v651 = vpack.c.bf16 %v648, %v647
        %v652 = vld [vmem:[#allocation8] sm:$0xf]
        %v653 = vld [vmem:[#allocation8 + $0x4] sm:$0xf]
        %v654 = vld [vmem:[#allocation8 + $0x8] sm:$0xf]
        %v655 = vld [vmem:[#allocation8 + $0xc] sm:$0xf]
        %v656 = vld [vmem:[#allocation8 + $0x10] sm:$0xf]
        %v657 = vld [vmem:[#allocation8 + $0x14] sm:$0xf]
        %v658 = vld [vmem:[#allocation8 + $0x18] sm:$0xf]
        %v659 = vld [vmem:[#allocation8 + $0x1c] sm:$0xf]
        %v660 = vld [vmem:[#allocation8 + $0x20] sm:$0xf]
        %v661 = vld [vmem:[#allocation8 + $0x24] sm:$0xf]
        %v662 = vld [vmem:[#allocation8 + $0x28] sm:$0xf]
        %v663 = vld [vmem:[#allocation8 + $0x2c] sm:$0xf]
        %v664 = vld [vmem:[#allocation8 + $0x30] sm:$0xf]
        %v665 = vld [vmem:[#allocation8 + $0x34] sm:$0xf]
        %v666 = vld [vmem:[#allocation8 + $0x38] sm:$0xf]
        %v667 = vld [vmem:[#allocation8 + $0x3c] sm:$0xf]
        %v668 = vld [vmem:[#allocation10] sm:$0xf]
        %v669 = vld [vmem:[#allocation10 + $0x4] sm:$0xf]
        %v670 = vld [vmem:[#allocation10 + $0x8] sm:$0xf]
        %v671 = vld [vmem:[#allocation10 + $0xc] sm:$0xf]
        %v672 = vld [vmem:[#allocation10 + $0x10] sm:$0xf]
        %v673 = vld [vmem:[#allocation10 + $0x14] sm:$0xf]
        %v674 = vld [vmem:[#allocation10 + $0x18] sm:$0xf]
        %v675 = vld [vmem:[#allocation10 + $0x1c] sm:$0xf]
        %v676 = vld [vmem:[#allocation10 + $0x20] sm:$0xf]
        %v677 = vld [vmem:[#allocation10 + $0x24] sm:$0xf]
        %v678 = vld [vmem:[#allocation10 + $0x28] sm:$0xf]
        %v679 = vld [vmem:[#allocation10 + $0x2c] sm:$0xf]
        %v680 = vld [vmem:[#allocation10 + $0x30] sm:$0xf]
        %v681 = vld [vmem:[#allocation10 + $0x34] sm:$0xf]
        %v682 = vld [vmem:[#allocation10 + $0x38] sm:$0xf]
        %v683 = vld [vmem:[#allocation10 + $0x3c] sm:$0xf]
        %v700 = vunpack.c.l.b16 %v668
        %v701 = vunpack.c.l.b16 %v669
        %v702 = vunpack.c.l.b16 %v670
        %v703 = vunpack.c.l.b16 %v671
        %v704 = vunpack.c.l.b16 %v672
        %v705 = vunpack.c.l.b16 %v673
        %v706 = vunpack.c.l.b16 %v674
        %v707 = vunpack.c.l.b16 %v675
        %v708 = vunpack.c.l.b16 %v676
        %v709 = vunpack.c.l.b16 %v677
        %v710 = vunpack.c.l.b16 %v678
        %v711 = vunpack.c.l.b16 %v679
        %v712 = vunpack.c.l.b16 %v680
        %v713 = vunpack.c.l.b16 %v681
        %v714 = vunpack.c.l.b16 %v682
        %v715 = vunpack.c.l.b16 %v683
        %v716 = vpack.c.b16 %v701, %v700
        %v717 = vpack.c.b16 %v703, %v702
        %v718 = vpack.c.b16 %v705, %v704
        %v719 = vpack.c.b16 %v707, %v706
        %v720 = vpack.c.b16 %v709, %v708
        %v721 = vpack.c.b16 %v711, %v710
        %v722 = vpack.c.b16 %v713, %v712
        %v723 = vpack.c.b16 %v715, %v714
        %732 = vmatprep.subr.bf16.mxu0 0
        %733 = vmatpush1.bf16.msra.mxu0 %v716
        %734 = vmatprep.subr.bf16.mxu0 0
        %735 = vmatpush1.bf16.msra.mxu0 %v717
        %736 = vmatprep.subr.bf16.mxu0 0
        %737 = vmatpush1.bf16.msra.mxu0 %v718
        %738 = vmatprep.subr.bf16.mxu0 0
        %739 = vmatpush1.bf16.msra.mxu0 %v719
        %740 = vmatprep.subr.bf16.mxu0 0
        %741 = vmatpush1.bf16.msra.mxu0 %v720
        %742 = vmatprep.subr.bf16.mxu0 0
        %743 = vmatpush1.bf16.msra.mxu0 %v721
        %744 = vmatprep.subr.bf16.mxu0 0
        %745 = vmatpush1.bf16.msra.mxu0 %v722
        %746 = vmatprep.subr.bf16.mxu0 0
        %747 = vmatpush1.bf16.msra.mxu0 %v723
        %748 = vmatprep.subr.bf16.mxu0 0
        %749 = vmatpush1.bf16.msra.mxu0 0
        %750 = vmatprep.subr.bf16.mxu0 0
        %751 = vmatpush1.bf16.msra.mxu0 0
        %752 = vmatprep.subr.bf16.mxu0 0
        %753 = vmatpush1.bf16.msra.mxu0 0
        %754 = vmatprep.subr.bf16.mxu0 0
        %755 = vmatpush1.bf16.msra.mxu0 0
        %756 = vmatprep.subr.bf16.mxu0 0
        %757 = vmatpush1.bf16.msra.mxu0 0
        %758 = vmatprep.subr.bf16.mxu0 0
        %759 = vmatpush1.bf16.msra.mxu0 0
        %760 = vmatprep.subr.bf16.mxu0 0
        %761 = vmatpush1.bf16.msra.mxu0 0
        %762 = vmatprep.subr.bf16.mxu0 0
        %763 = vmatpush1.bf16.msra.mxu0 0
        %764 = vmatprep.mubr.bf16.mxu0 0
        %765 = vmatmul.mubr.bf16.gmra.mrb[0].mxu0 %v649
        %v766 = vpop.f32.mrb[0].mxu0
        %v767 = vadd.f32 0.0, %v766
        %v768 = vpop.f32.mrb[0].mxu0
        %v769 = vpop.f32.mrb[0].mxu0
        %v770 = vadd.f32 0.0, %v769
        %v771 = vpop.f32.mrb[0].mxu0
        %772 = vdwg.mxu0
        %v789 = vunpack.c.l.b16 %v652
        %v790 = vunpack.c.l.b16 %v653
        %v791 = vunpack.c.l.b16 %v654
        %v792 = vunpack.c.l.b16 %v655
        %v793 = vunpack.c.l.b16 %v656
        %v794 = vunpack.c.l.b16 %v657
        %v795 = vunpack.c.l.b16 %v658
        %v796 = vunpack.c.l.b16 %v659
        %v797 = vunpack.c.l.b16 %v660
        %v798 = vunpack.c.l.b16 %v661
        %v799 = vunpack.c.l.b16 %v662
        %v800 = vunpack.c.l.b16 %v663
        %v801 = vunpack.c.l.b16 %v664
        %v802 = vunpack.c.l.b16 %v665
        %v803 = vunpack.c.l.b16 %v666
        %v804 = vunpack.c.l.b16 %v667
        %v805 = vpack.c.b16 %v790, %v789
        %v806 = vpack.c.b16 %v792, %v791
        %v807 = vpack.c.b16 %v794, %v793
        %v808 = vpack.c.b16 %v796, %v795
        %v809 = vpack.c.b16 %v798, %v797
        %v810 = vpack.c.b16 %v800, %v799
        %v811 = vpack.c.b16 %v802, %v801
        %v812 = vpack.c.b16 %v804, %v803
        %821 = vmatprep.subr.bf16.mxu0 0
        %822 = vmatpush1.bf16.msra.mxu0 %v805
        %823 = vmatprep.subr.bf16.mxu0 0
        %824 = vmatpush1.bf16.msra.mxu0 %v806
        %825 = vmatprep.subr.bf16.mxu0 0
        %826 = vmatpush1.bf16.msra.mxu0 %v807
        %827 = vmatprep.subr.bf16.mxu0 0
        %828 = vmatpush1.bf16.msra.mxu0 %v808
        %829 = vmatprep.subr.bf16.mxu0 0
        %830 = vmatpush1.bf16.msra.mxu0 %v809
        %831 = vmatprep.subr.bf16.mxu0 0
        %832 = vmatpush1.bf16.msra.mxu0 %v810
        %833 = vmatprep.subr.bf16.mxu0 0
        %834 = vmatpush1.bf16.msra.mxu0 %v811
        %835 = vmatprep.subr.bf16.mxu0 0
        %836 = vmatpush1.bf16.msra.mxu0 %v812
        %837 = vmatprep.subr.bf16.mxu0 0
        %838 = vmatpush1.bf16.msra.mxu0 0
        %839 = vmatprep.subr.bf16.mxu0 0
        %840 = vmatpush1.bf16.msra.mxu0 0
        %841 = vmatprep.subr.bf16.mxu0 0
        %842 = vmatpush1.bf16.msra.mxu0 0
        %843 = vmatprep.subr.bf16.mxu0 0
        %844 = vmatpush1.bf16.msra.mxu0 0
        %845 = vmatprep.subr.bf16.mxu0 0
        %846 = vmatpush1.bf16.msra.mxu0 0
        %847 = vmatprep.subr.bf16.mxu0 0
        %848 = vmatpush1.bf16.msra.mxu0 0
        %849 = vmatprep.subr.bf16.mxu0 0
        %850 = vmatpush1.bf16.msra.mxu0 0
        %851 = vmatprep.subr.bf16.mxu0 0
        %852 = vmatpush1.bf16.msra.mxu0 0
        %853 = vmatprep.mubr.bf16.mxu0 0
        %854 = vmatmul.mubr.bf16.gmra.mrb[0].mxu0 %v650
        %v855 = vpop.f32.mrb[0].mxu0
        %v856 = vadd.f32 %v767, %v855
        %v857 = vpop.f32.mrb[0].mxu0
        %v858 = vpop.f32.mrb[0].mxu0
        %v859 = vadd.f32 %v770, %v858
        %v860 = vpop.f32.mrb[0].mxu0
        %861 = vdwg.mxu0
        %v862 = vld [vmem:[#allocation11] sm:$0xf]
        %v863 = vld [vmem:[#allocation11 + $0x4] sm:$0xf]
        %v864 = vld [vmem:[#allocation11 + $0x8] sm:$0xf]
        %v865 = vld [vmem:[#allocation11 + $0xc] sm:$0xf]
        %v866 = vld [vmem:[#allocation11 + $0x10] sm:$0xf]
        %v867 = vld [vmem:[#allocation11 + $0x14] sm:$0xf]
        %v868 = vld [vmem:[#allocation11 + $0x18] sm:$0xf]
        %v869 = vld [vmem:[#allocation11 + $0x1c] sm:$0xf]
        %v870 = vld [vmem:[#allocation11 + $0x20] sm:$0xf]
        %v871 = vld [vmem:[#allocation11 + $0x24] sm:$0xf]
        %v872 = vld [vmem:[#allocation11 + $0x28] sm:$0xf]
        %v873 = vld [vmem:[#allocation11 + $0x2c] sm:$0xf]
        %v874 = vld [vmem:[#allocation11 + $0x30] sm:$0xf]
        %v875 = vld [vmem:[#allocation11 + $0x34] sm:$0xf]
        %v876 = vld [vmem:[#allocation11 + $0x38] sm:$0xf]
        %v877 = vld [vmem:[#allocation11 + $0x3c] sm:$0xf]
        %v894 = vunpack.c.l.b16 %v862
        %v895 = vunpack.c.l.b16 %v863
        %v896 = vunpack.c.l.b16 %v864
        %v897 = vunpack.c.l.b16 %v865
        %v898 = vunpack.c.l.b16 %v866
        %v899 = vunpack.c.l.b16 %v867
        %v900 = vunpack.c.l.b16 %v868
        %v901 = vunpack.c.l.b16 %v869
        %v902 = vunpack.c.l.b16 %v870
        %v903 = vunpack.c.l.b16 %v871
        %v904 = vunpack.c.l.b16 %v872
        %v905 = vunpack.c.l.b16 %v873
        %v906 = vunpack.c.l.b16 %v874
        %v907 = vunpack.c.l.b16 %v875
        %v908 = vunpack.c.l.b16 %v876
        %v909 = vunpack.c.l.b16 %v877
        %v910 = vpack.c.b16 %v895, %v894
        %v911 = vpack.c.b16 %v897, %v896
        %v912 = vpack.c.b16 %v899, %v898
        %v913 = vpack.c.b16 %v901, %v900
        %v914 = vpack.c.b16 %v903, %v902
        %v915 = vpack.c.b16 %v905, %v904
        %v916 = vpack.c.b16 %v907, %v906
        %v917 = vpack.c.b16 %v909, %v908
        %926 = vmatprep.subr.bf16.mxu0 0
        %927 = vmatpush1.bf16.msra.mxu0 %v910
        %928 = vmatprep.subr.bf16.mxu0 0
        %929 = vmatpush1.bf16.msra.mxu0 %v911
        %930 = vmatprep.subr.bf16.mxu0 0
        %931 = vmatpush1.bf16.msra.mxu0 %v912
        %932 = vmatprep.subr.bf16.mxu0 0
        %933 = vmatpush1.bf16.msra.mxu0 %v913
        %934 = vmatprep.subr.bf16.mxu0 0
        %935 = vmatpush1.bf16.msra.mxu0 %v914
        %936 = vmatprep.subr.bf16.mxu0 0
        %937 = vmatpush1.bf16.msra.mxu0 %v915
        %938 = vmatprep.subr.bf16.mxu0 0
        %939 = vmatpush1.bf16.msra.mxu0 %v916
        %940 = vmatprep.subr.bf16.mxu0 0
        %941 = vmatpush1.bf16.msra.mxu0 %v917
        %942 = vmatprep.subr.bf16.mxu0 0
        %943 = vmatpush1.bf16.msra.mxu0 0
        %944 = vmatprep.subr.bf16.mxu0 0
        %945 = vmatpush1.bf16.msra.mxu0 0
        %946 = vmatprep.subr.bf16.mxu0 0
        %947 = vmatpush1.bf16.msra.mxu0 0
        %948 = vmatprep.subr.bf16.mxu0 0
        %949 = vmatpush1.bf16.msra.mxu0 0
        %950 = vmatprep.subr.bf16.mxu0 0
        %951 = vmatpush1.bf16.msra.mxu0 0
        %952 = vmatprep.subr.bf16.mxu0 0
        %953 = vmatpush1.bf16.msra.mxu0 0
        %954 = vmatprep.subr.bf16.mxu0 0
        %955 = vmatpush1.bf16.msra.mxu0 0
        %956 = vmatprep.subr.bf16.mxu0 0
        %957 = vmatpush1.bf16.msra.mxu0 0
        %958 = vmatprep.mubr.bf16.mxu0 0
        %959 = vmatmul.mubr.bf16.gmra.mrb[0].mxu0 %v651
        %v960 = vpop.f32.mrb[0].mxu0
        %v961 = vadd.f32 0.0, %v960
        %v962 = vpop.f32.mrb[0].mxu0
        %v963 = vpop.f32.mrb[0].mxu0
        %v964 = vadd.f32 0.0, %v963
        %v965 = vpop.f32.mrb[0].mxu0
        %966 = vdwg.mxu0
        %v967 = vadd.f32 %v856, %v961
        %v968 = vadd.f32 %v859, %v964
        %v969 = vld [vmem:[#allocation13] sm:$0x1]
        %v971 = vlaneseq
        %v972 = vshrl.u32 %v971, 7
        %v973 = vsub.s32 0, %v972
        %v974 = vrot.slane %v969, %v973
        %v976 = vadd.f32 %v967, %v974
        %v977 = vadd.f32 %v968, %v974
        %v978 = vmax.f32 %v976, 0.0
        %v979 = vmax.f32 %v977, 0.0
        %v980 = vpack.c.bf16 %v979, %v978
        %v981 = vld [vmem:[#allocation14] sm:$0xff]
        %v982 = vld [vmem:[#allocation14 + $0x8] sm:$0xff]
        %v983 = vld [vmem:[#allocation14 + $0x10] sm:$0xff]
        %v984 = vld [vmem:[#allocation14 + $0x18] sm:$0xff]
        %v985 = vld [vmem:[#allocation14 + $0x20] sm:$0xff]
        %v986 = vld [vmem:[#allocation14 + $0x28] sm:$0xff]
        %v987 = vld [vmem:[#allocation14 + $0x30] sm:$0xff]
        %v988 = vld [vmem:[#allocation14 + $0x38] sm:$0xff]
        %v989 = vld [vmem:[#allocation14 + $0x40] sm:$0xff]
        %v990 = vld [vmem:[#allocation14 + $0x48] sm:$0xff]
        %v991 = vld [vmem:[#allocation14 + $0x50] sm:$0xff]
        %v992 = vld [vmem:[#allocation14 + $0x58] sm:$0xff]
        %v993 = vld [vmem:[#allocation14 + $0x60] sm:$0xff]
        %v994 = vld [vmem:[#allocation14 + $0x68] sm:$0xff]
        %v995 = vld [vmem:[#allocation14 + $0x70] sm:$0xff]
        %v996 = vld [vmem:[#allocation14 + $0x78] sm:$0xff]
        %v997 = vld [vmem:[#allocation16] sm:$0xff]
        %v998 = vld [vmem:[#allocation16 + $0x8] sm:$0xff]
        %v999 = vld [vmem:[#allocation16 + $0x10] sm:$0xff]
        %v1000 = vld [vmem:[#allocation16 + $0x18] sm:$0xff]
        %v1001 = vld [vmem:[#allocation16 + $0x20] sm:$0xff]
        %v1002 = vld [vmem:[#allocation16 + $0x28] sm:$0xff]
        %v1003 = vld [vmem:[#allocation16 + $0x30] sm:$0xff]
        %v1004 = vld [vmem:[#allocation16 + $0x38] sm:$0xff]
        %v1005 = vld [vmem:[#allocation16 + $0x40] sm:$0xff]
        %v1006 = vld [vmem:[#allocation16 + $0x48] sm:$0xff]
        %v1007 = vld [vmem:[#allocation16 + $0x50] sm:$0xff]
        %v1008 = vld [vmem:[#allocation16 + $0x58] sm:$0xff]
        %v1009 = vld [vmem:[#allocation16 + $0x60] sm:$0xff]
        %v1010 = vld [vmem:[#allocation16 + $0x68] sm:$0xff]
        %v1011 = vld [vmem:[#allocation16 + $0x70] sm:$0xff]
        %v1012 = vld [vmem:[#allocation16 + $0x78] sm:$0xff]
        %v1029 = vunpack.c.l.b16 %v997
        %v1030 = vunpack.c.h.b16 %v997
        %v1031 = vunpack.c.l.b16 %v998
        %v1032 = vunpack.c.h.b16 %v998
        %v1033 = vunpack.c.l.b16 %v999
        %v1034 = vunpack.c.h.b16 %v999
        %v1035 = vunpack.c.l.b16 %v1000
        %v1036 = vunpack.c.h.b16 %v1000
        %v1037 = vunpack.c.l.b16 %v1001
        %v1038 = vunpack.c.h.b16 %v1001
        %v1039 = vunpack.c.l.b16 %v1002
        %v1040 = vunpack.c.h.b16 %v1002
        %v1041 = vunpack.c.l.b16 %v1003
        %v1042 = vunpack.c.h.b16 %v1003
        %v1043 = vunpack.c.l.b16 %v1004
        %v1044 = vunpack.c.h.b16 %v1004
        %v1045 = vunpack.c.l.b16 %v1005
        %v1046 = vunpack.c.h.b16 %v1005
        %v1047 = vunpack.c.l.b16 %v1006
        %v1048 = vunpack.c.h.b16 %v1006
        %v1049 = vunpack.c.l.b16 %v1007
        %v1050 = vunpack.c.h.b16 %v1007
        %v1051 = vunpack.c.l.b16 %v1008
        %v1052 = vunpack.c.h.b16 %v1008
        %v1053 = vunpack.c.l.b16 %v1009
        %v1054 = vunpack.c.h.b16 %v1009
        %v1055 = vunpack.c.l.b16 %v1010
        %v1056 = vunpack.c.h.b16 %v1010
        %v1057 = vunpack.c.l.b16 %v1011
        %v1058 = vunpack.c.h.b16 %v1011
        %v1059 = vunpack.c.l.b16 %v1012
        %v1060 = vunpack.c.h.b16 %v1012
        %v1061 = vpack.c.b16 %v1031, %v1029
        %v1062 = vpack.c.b16 %v1032, %v1030
        %v1063 = vpack.c.b16 %v1035, %v1033
        %v1064 = vpack.c.b16 %v1036, %v1034
        %v1065 = vpack.c.b16 %v1039, %v1037
        %v1066 = vpack.c.b16 %v1040, %v1038
        %v1067 = vpack.c.b16 %v1043, %v1041
        %v1068 = vpack.c.b16 %v1044, %v1042
        %v1069 = vpack.c.b16 %v1047, %v1045
        %v1070 = vpack.c.b16 %v1048, %v1046
        %v1071 = vpack.c.b16 %v1051, %v1049
        %v1072 = vpack.c.b16 %v1052, %v1050
        %v1073 = vpack.c.b16 %v1055, %v1053
        %v1074 = vpack.c.b16 %v1056, %v1054
        %v1075 = vpack.c.b16 %v1059, %v1057
        %v1076 = vpack.c.b16 %v1060, %v1058
        %1093 = vmatprep.subr.bf16.mxu0 %v1062
        %1094 = vmatpush1.bf16.msra.mxu0 %v1061
        %1095 = vmatprep.subr.bf16.mxu0 %v1064
        %1096 = vmatpush1.bf16.msra.mxu0 %v1063
        %1097 = vmatprep.subr.bf16.mxu0 %v1066
        %1098 = vmatpush1.bf16.msra.mxu0 %v1065
        %1099 = vmatprep.subr.bf16.mxu0 %v1068
        %1100 = vmatpush1.bf16.msra.mxu0 %v1067
        %1101 = vmatprep.subr.bf16.mxu0 %v1070
        %1102 = vmatpush1.bf16.msra.mxu0 %v1069
        %1103 = vmatprep.subr.bf16.mxu0 %v1072
        %1104 = vmatpush1.bf16.msra.mxu0 %v1071
        %1105 = vmatprep.subr.bf16.mxu0 %v1074
        %1106 = vmatpush1.bf16.msra.mxu0 %v1073
        %1107 = vmatprep.subr.bf16.mxu0 %v1076
        %1108 = vmatpush1.bf16.msra.mxu0 %v1075
        %1109 = vmatprep.subr.bf16.mxu0 0
        %1110 = vmatpush1.bf16.msra.mxu0 0
        %1111 = vmatprep.subr.bf16.mxu0 0
        %1112 = vmatpush1.bf16.msra.mxu0 0
        %1113 = vmatprep.subr.bf16.mxu0 0
        %1114 = vmatpush1.bf16.msra.mxu0 0
        %1115 = vmatprep.subr.bf16.mxu0 0
        %1116 = vmatpush1.bf16.msra.mxu0 0
        %1117 = vmatprep.subr.bf16.mxu0 0
        %1118 = vmatpush1.bf16.msra.mxu0 0
        %1119 = vmatprep.subr.bf16.mxu0 0
        %1120 = vmatpush1.bf16.msra.mxu0 0
        %1121 = vmatprep.subr.bf16.mxu0 0
        %1122 = vmatpush1.bf16.msra.mxu0 0
        %1123 = vmatprep.subr.bf16.mxu0 0
        %1124 = vmatpush1.bf16.msra.mxu0 0
        %1125 = vmatprep.mubr.bf16.mxu0 0
        %1126 = vmatmul.mubr.bf16.gmra.mrb[0].mxu0 %v535
        %v1127 = vpop.f32.mrb[0].mxu0
        %v1128 = vadd.f32 0.0, %v1127
        %v1129 = vpop.f32.mrb[0].mxu0
        %v1130 = vadd.f32 0.0, %v1129
        %v1131 = vpop.f32.mrb[0].mxu0
        %v1132 = vadd.f32 0.0, %v1131
        %v1133 = vpop.f32.mrb[0].mxu0
        %v1134 = vadd.f32 0.0, %v1133
        %1135 = vdwg.mxu0
        %v1152 = vunpack.c.l.b16 %v981
        %v1153 = vunpack.c.h.b16 %v981
        %v1154 = vunpack.c.l.b16 %v982
        %v1155 = vunpack.c.h.b16 %v982
        %v1156 = vunpack.c.l.b16 %v983
        %v1157 = vunpack.c.h.b16 %v983
        %v1158 = vunpack.c.l.b16 %v984
        %v1159 = vunpack.c.h.b16 %v984
        %v1160 = vunpack.c.l.b16 %v985
        %v1161 = vunpack.c.h.b16 %v985
        %v1162 = vunpack.c.l.b16 %v986
        %v1163 = vunpack.c.h.b16 %v986
        %v1164 = vunpack.c.l.b16 %v987
        %v1165 = vunpack.c.h.b16 %v987
        %v1166 = vunpack.c.l.b16 %v988
        %v1167 = vunpack.c.h.b16 %v988
        %v1168 = vunpack.c.l.b16 %v989
        %v1169 = vunpack.c.h.b16 %v989
        %v1170 = vunpack.c.l.b16 %v990
        %v1171 = vunpack.c.h.b16 %v990
        %v1172 = vunpack.c.l.b16 %v991
        %v1173 = vunpack.c.h.b16 %v991
        %v1174 = vunpack.c.l.b16 %v992
        %v1175 = vunpack.c.h.b16 %v992
        %v1176 = vunpack.c.l.b16 %v993
        %v1177 = vunpack.c.h.b16 %v993
        %v1178 = vunpack.c.l.b16 %v994
        %v1179 = vunpack.c.h.b16 %v994
        %v1180 = vunpack.c.l.b16 %v995
        %v1181 = vunpack.c.h.b16 %v995
        %v1182 = vunpack.c.l.b16 %v996
        %v1183 = vunpack.c.h.b16 %v996
        %v1184 = vpack.c.b16 %v1154, %v1152
        %v1185 = vpack.c.b16 %v1155, %v1153
        %v1186 = vpack.c.b16 %v1158, %v1156
        %v1187 = vpack.c.b16 %v1159, %v1157
        %v1188 = vpack.c.b16 %v1162, %v1160
        %v1189 = vpack.c.b16 %v1163, %v1161
        %v1190 = vpack.c.b16 %v1166, %v1164
        %v1191 = vpack.c.b16 %v1167, %v1165
        %v1192 = vpack.c.b16 %v1170, %v1168
        %v1193 = vpack.c.b16 %v1171, %v1169
        %v1194 = vpack.c.b16 %v1174, %v1172
        %v1195 = vpack.c.b16 %v1175, %v1173
        %v1196 = vpack.c.b16 %v1178, %v1176
        %v1197 = vpack.c.b16 %v1179, %v1177
        %v1198 = vpack.c.b16 %v1182, %v1180
        %v1199 = vpack.c.b16 %v1183, %v1181
        %1216 = vmatprep.subr.bf16.mxu0 %v1185
        %1217 = vmatpush1.bf16.msra.mxu0 %v1184
        %1218 = vmatprep.subr.bf16.mxu0 %v1187
        %1219 = vmatpush1.bf16.msra.mxu0 %v1186
        %1220 = vmatprep.subr.bf16.mxu0 %v1189
        %1221 = vmatpush1.bf16.msra.mxu0 %v1188
        %1222 = vmatprep.subr.bf16.mxu0 %v1191
        %1223 = vmatpush1.bf16.msra.mxu0 %v1190
        %1224 = vmatprep.subr.bf16.mxu0 %v1193
        %1225 = vmatpush1.bf16.msra.mxu0 %v1192
        %1226 = vmatprep.subr.bf16.mxu0 %v1195
        %1227 = vmatpush1.bf16.msra.mxu0 %v1194
        %1228 = vmatprep.subr.bf16.mxu0 %v1197
        %1229 = vmatpush1.bf16.msra.mxu0 %v1196
        %1230 = vmatprep.subr.bf16.mxu0 %v1199
        %1231 = vmatpush1.bf16.msra.mxu0 %v1198
        %1232 = vmatprep.subr.bf16.mxu0 0
        %1233 = vmatpush1.bf16.msra.mxu0 0
        %1234 = vmatprep.subr.bf16.mxu0 0
        %1235 = vmatpush1.bf16.msra.mxu0 0
        %1236 = vmatprep.subr.bf16.mxu0 0
        %1237 = vmatpush1.bf16.msra.mxu0 0
        %1238 = vmatprep.subr.bf16.mxu0 0
        %1239 = vmatpush1.bf16.msra.mxu0 0
        %1240 = vmatprep.subr.bf16.mxu0 0
        %1241 = vmatpush1.bf16.msra.mxu0 0
        %1242 = vmatprep.subr.bf16.mxu0 0
        %1243 = vmatpush1.bf16.msra.mxu0 0
        %1244 = vmatprep.subr.bf16.mxu0 0
        %1245 = vmatpush1.bf16.msra.mxu0 0
        %1246 = vmatprep.subr.bf16.mxu0 0
        %1247 = vmatpush1.bf16.msra.mxu0 0
        %1248 = vmatprep.mubr.bf16.mxu0 0
        %1249 = vmatmul.mubr.bf16.gmra.mrb[0].mxu0 %v980
        %v1250 = vpop.f32.mrb[0].mxu0
        %v1251 = vadd.f32 %v1128, %v1250
        %v1252 = vpop.f32.mrb[0].mxu0
        %v1253 = vadd.f32 %v1130, %v1252
        %v1254 = vpop.f32.mrb[0].mxu0
        %v1255 = vadd.f32 %v1132, %v1254
        %v1256 = vpop.f32.mrb[0].mxu0
        %v1257 = vadd.f32 %v1134, %v1256
        %1258 = vdwg.mxu0
        %v1259 = vld [vmem:[#allocation17] sm:$0x3]
        %v1261 = vlaneseq
        %v1262 = vshrl.u32 %v1261, 7
        %v1263 = vsub.s32 0, %v1262
        %v1264 = vrot.slane %v1259, %v1263
        %v1265 = vlaneseq
        %v1266 = vshrl.u32 %v1265, 7
        %v1267 = vsub.s32 1, %v1266
        %v1268 = vrot.slane %v1259, %v1267
        %v1271 = vadd.f32 %v1251, %v1264
        %v1272 = vadd.f32 %v1253, %v1268
        %v1273 = vadd.f32 %v1255, %v1264
        %v1274 = vadd.f32 %v1257, %v1268
        %v1275 = vmax.f32 %v1271, 0.0
        %v1276 = vmax.f32 %v1272, 0.0
        %v1277 = vmax.f32 %v1273, 0.0
        %v1278 = vmax.f32 %v1274, 0.0
        %1279 = vst [vmem:[%s502] sm:$0xff] %v1275
        %1280 = vst [vmem:[%s502 + $0x8] sm:$0xff] %v1276
        %1281 = vst [vmem:[%s502 + $0x10] sm:$0xff] %v1277
        %1282 = vst [vmem:[%s502 + $0x18] sm:$0xff] %v1278
        %s1283 = sand.u32 %s255, 1
        %s1284 = scalar_lea.sflag [#allocation4], %s1283
        %s1285 = sand.u32 %s255, 1
        %s1286 = smul.addr %s1285, 32
        %s1287 = scalar_lea.vmem [#allocation19], %s1286
        // Predicated region
        $region101: #{bottleneck_forward.1} parent=59 // pred_check
          %p1288 = pneg %p265
        $region102: #{bottleneck_forward.1} parent=59 // pred_check_branch
          %1290 = sbr.rel (%p1288) target = $region104
        $region103: #{bottleneck_forward.1} parent=59 // pred_region
          %s1291 = smul.u32 2, %s32
          %s1293 = ssub.s32 512, 512
          %1294 = vsyncadd %s1284, %s1293
          %s1295 = smul.addr %s1291, 2
          %s1296 = smul.addr %s1295, 128
          %s1297 = scalar_lea.hbm %s10, %s1296
          %s1298 = sshll.u32 %s1287, 4
          %s1299 = int_to_ptr.vmem [resolvable:$true] %s1298
          %1304 = dma.vmem_to_hbm [thread:$0]  %s1299, 512, %s1297, %s1284, 256, 256, 16
        $region104: #{bottleneck_forward.1} parent=59 // pred_fallthru
          _
      $region60: #{bottleneck_forward.1} parent=5 // pred_fallthru
        _
      %p1305 = scmp.le.s32.totalorder 2, %s27
      // Predicated region
      $region105: #{bottleneck_forward.1} parent=5 // pred_check
        %p1306 = pneg %p1305
      $region106: #{bottleneck_forward.1} parent=5 // pred_check_branch
        %1308 = sbr.rel (%p1306) target = $region108
      $region107: #{bottleneck_forward.1} parent=5 // pred_region
        %s1309 = ssub.s32 %s27, 2
        // Predicated region
        $region109: #{bottleneck_forward.1} parent=107 // pred_check
          %p1310 = pneg %p271
        $region110: #{bottleneck_forward.1} parent=107 // pred_check_branch
          %1312 = sbr.rel (%p1310) target = $region112
        $region111: #{bottleneck_forward.1} parent=107 // pred_region
          %s1313 = sand.u32 %s256, 1
          %s1314 = scalar_lea.sflag [#allocation4], %s1313
          %s1315 = sand.u32 %s256, 1
          %s1316 = smul.addr %s1315, 32
          %s1317 = scalar_lea.vmem [#allocation19], %s1316
          %1318 = dma.done %s1314, 512
        $region112: #{bottleneck_forward.1} parent=107 // pred_fallthru
          _
      $region108: #{bottleneck_forward.1} parent=5 // pred_fallthru
        _
    $region6: #{bottleneck_forward.1} parent=1 // loop_footer
      %s31 = sadd.s32 1, %s27
    $region7: #{bottleneck_forward.1} parent=1 // loop_footer_branch
      %26 = sbr.rel target = $region3
    $region8: #{bottleneck_forward.1} parent=1 // loop_exit
      _
    %1319 = vsyncpa [#allocation3], 1
    %s1320 = scalar_lea.sflag [#allocation3], 1
    %1321 = vsyncpa %s1320, 1
    %1322 = vsyncpa [#allocation6], 1
    %1323 = vsyncpa [#allocation9], 1
    %1324 = vsyncpa [#allocation12], 1
    %1325 = vsyncpa [#allocation15], 1
    %1326 = vsyncpa [#allocation18], 1
    %1327 = vsyncpa [#allocation4], 1
    %s1328 = scalar_lea.sflag [#allocation4], 1
    %1329 = vsyncpa %s1328, 1

</llo_original>
